<compile_context>
chip_gen: v5e
topology: v5e:2x2
jax: 0.10.0
libtpu: 0.0.40
codegen_flags: <defaults>
</compile_context>

<pallas_src>
import math
import numpy as np
import jax
import jax.numpy as jnp
from jax import lax
from jax.experimental import pallas as pl
from jax.experimental.pallas import tpu as pltpu

# ----------------------------- hyperparameters (small) -----------------------------
B = 2                      # batch_size
NPRATIO = 3
CDD = NPRATIO + 1          # cdd_size = 4
HIS = 4                    # his_size
L = 8                      # title_size / signal_length
E = 32                     # embedding_dim
H = 2                      # head_num
VD = 16                    # value_dim
QD = 16                    # query_dim
REPR = H * VD              # 32
K = 20                     # kernel_num = len(arange(-0.9, 1.1, 0.1))
T = K // 2                 # RBF kernels are processed two-per-pass (lane packed)
VOCAB = 100

NCDD = B * CDD             # 8 candidate news
NHIS = B * HIS             # 8 history news
NN = NCDD + NHIS           # 16 news items total
NL = NN * L                # 128 stacked word rows fed to the encoder
CW = NCDD * L              # 64 candidate word rows
HW = NHIS * L              # 64 history word rows

INV_SQRT_E = 1.0 / math.sqrt(E)
NEG = -1e30                # large negative (== -inf after softmax/argmax)

# --------------------- packed constant slab row layout (cpack) ---------------------
ROW_BK = 0                 # keyProject bias            lanes [0:QD]
ROW_QW = 1                 # query_words / sqrt(E)      lanes [0:QD]
ROW_BLTR = 2               # learningToRank bias        lane  [0]
ROW_WB16 = 8               # word-attn block bias       [NN, NL]
ROW_MU = 24                # RBF mu   rows (packed lo|hi)   [T, 128]
ROW_NA = 40                # RBF -1/(2 sigma^2) rows        [T, 128]
ROW_W = 56                 # learningToRank weight rows     [T, 128]
ROW_WQ = 72                # per-head Wq^T / sqrt(E)    [H*E, E]
ROW_WVP = ROW_WQ + H * E   # per-head Wv^T (lane padded)[H*E, REPR]
ROW_WK = ROW_WVP + H * E   # keyProject weight^T        [REPR, QD]
ROW_BLK2 = ROW_WK + REPR   # word-row -> pair indicator [NL, NCDD]
ROW_NB = ROW_BLK2 + NL     # self-attn block-diag bias  [NL, NL]
CROWS = ROW_NB + NL        # 488 rows total


# --------------------------------- fused kernel ---------------------------------
def gca_fused_kernel(x_ref, c_ref, nbn_ref, out_ref):
    # x_ref  : (NL, E)      stacked word embeddings [cdd rows ; his rows]
    # c_ref  : (CROWS, 128) packed weights + precomputed masks / RBF constants
    # nbn_ref: (NCDD, NHIS) additive bias: gumbel noise on valid slots, -1e30 elsewhere
    # out_ref: (1, NCDD)    raw click scores
    f32 = jnp.float32

    x = x_ref[...]                                                   # [128, 32]
    # L2-normalized rows for the cosine interaction (torch CosineSimilarity, eps=1e-8)
    inv_norm = lax.rsqrt(jnp.maximum(jnp.sum(x * x, axis=-1, keepdims=True), 1e-16))
    xn = x * inv_norm                                                # [128, 32]

    # ------------------- news encoder: all 16 news in one shot -------------------
    value = jnp.zeros((NL, REPR), f32)
    for h in range(H):                                               # H = 2, unrolled
        wq_h = c_ref[ROW_WQ + h * E:ROW_WQ + (h + 1) * E, 0:E]       # pre-scaled by 1/sqrt(E)
        q = jnp.dot(x, wq_h, preferred_element_type=f32)             # [128, 32]
        s = lax.dot_general(q, x, (((1,), (1,)), ((), ())),
                            preferred_element_type=f32)
        s = s + c_ref[ROW_NB:ROW_NB + NL, :]                         # block-diag bias
        m = jnp.max(s, axis=-1, keepdims=True)
        p = jnp.exp(s - m)
        l = jnp.sum(p, axis=-1, keepdims=True)
        a = p * pl.reciprocal(l, approx=True)                        # per-news softmax
        av = jnp.dot(a, x, preferred_element_type=f32)               # [128, 32]
        wvp_h = c_ref[ROW_WVP + h * E:ROW_WVP + (h + 1) * E, 0:REPR] # zero-padded Wv
        value = value + jnp.dot(av, wvp_h, preferred_element_type=f32)

    # word-level additive attention -> news representations
    wk = c_ref[ROW_WK:ROW_WK + REPR, 0:QD]
    bk = c_ref[ROW_BK:ROW_BK + 1, 0:QD]
    key = jnp.tanh(jnp.dot(value, wk, preferred_element_type=f32) + bk)   # [128, QD]
    qw = c_ref[ROW_QW:ROW_QW + 1, 0:QD]                              # pre-scaled
    sc = lax.dot_general(qw, key, (((1,), (1,)), ((), ())),
                         preferred_element_type=f32)                 # [1, 128]
    wl = sc + c_ref[ROW_WB16:ROW_WB16 + NN, :]                       # [16, 128]
    wm = jnp.max(wl, axis=-1, keepdims=True)
    wp = jnp.exp(wl - wm)
    ws = jnp.sum(wp, axis=-1, keepdims=True)
    wmat = wp * pl.reciprocal(ws, approx=True)
    enc = jnp.dot(wmat, value, preferred_element_type=f32)           # [16, REPR]

    cdd_attn = enc[0:NCDD, :]                                        # [8, 32]
    his_attn = enc[NCDD:NN, :]                                       # [8, 32]

    # ------------- news-level attention: hard-gumbel history selection -----------
    logits = lax.dot_general(cdd_attn, his_attn, (((1,), (1,)), ((), ())),
                             preferred_element_type=f32)             # [8, 8]
    z = logits + nbn_ref[...]                                        # + gumbel / -1e30 mask
    zmax = jnp.max(z, axis=-1, keepdims=True)
    pos = lax.broadcasted_iota(jnp.int32, (NCDD, NHIS), 1)
    first = jnp.min(jnp.where(z == zmax, pos, NHIS), axis=-1, keepdims=True)
    onehot = (pos == first).astype(f32)                              # [8, 8]
    # TODO(synk): if an entire history row is masked, torch gumbel_softmax yields NaN;
    # here the argmax falls back to an arbitrary slot instead.

    # ---------------- fusion: cosine interaction + KNRM pooling ------------------
    # selection mask at word granularity, duplicated along lanes (2 RBF kernels/pass):
    # sel2[j, i]  (i taken mod 64) == onehot[pair(i), news(j)]
    blk64 = c_ref[ROW_BLK2:ROW_BLK2 + CW, 0:NCDD]                    # [64, 8]
    blk2 = c_ref[ROW_BLK2:ROW_BLK2 + NL, 0:NCDD]                     # [128, 8]
    t1 = lax.dot_general(blk64, onehot, (((1,), (1,)), ((), ())),
                         preferred_element_type=f32)                 # [64, 8]
    sel2 = lax.dot_general(t1, blk2, (((1,), (1,)), ((), ())),
                           preferred_element_type=f32)               # [64, 128]

    # cosine of every history word vs every candidate word, lane-duplicated
    cdd2 = jnp.concatenate([xn[0:CW, :], xn[0:CW, :]], axis=0)       # [128, 32]
    cos2 = lax.dot_general(xn[CW:NL, :], cdd2, (((1,), (1,)), ((), ())),
                           preferred_element_type=f32)               # [64, 128]
    # off-selection entries -> 1e4 so every RBF kernel underflows to exactly 0 there
    sim2 = sel2 * (cos2 - 1e4) + 1e4                                 # [64, 128]

    # KNRM RBF pooling: two kernels per pass (lanes 0:64 / 64:128), K/2 = 10 passes.
    acc = jnp.zeros((1, 2 * CW), f32)
    for t in range(T):
        mu = c_ref[ROW_MU + t:ROW_MU + t + 1, :]                     # [1, 128]
        na = c_ref[ROW_NA + t:ROW_NA + t + 1, :]                     # -1/(2 sigma^2)
        w = c_ref[ROW_W + t:ROW_W + t + 1, :]                        # wltr weights
        d = sim2 - mu
        e = jnp.exp(d * d * na)                                      # [64, 128]
        pm = jnp.sum(e, axis=0, keepdims=True)                       # sum over his words
        acc = acc + w * jnp.log(jnp.maximum(pm, 1e-10))

    bltr = c_ref[ROW_BLTR:ROW_BLTR + 1, 0:1]
    score = jnp.dot(acc, blk2, preferred_element_type=f32) + bltr    # [1, 8] per-pair sum
    out_ref[...] = score


# --------------------------- host-side constant packing ---------------------------
def pack_constants(params):
    cp = np.zeros((CROWS, 128), np.float32)
    cp[ROW_BK, :QD] = np.asarray(params["bk"]).reshape(QD)
    cp[ROW_QW, :QD] = np.asarray(params["qw"]).reshape(QD) * INV_SQRT_E
    cp[ROW_BLTR, 0] = float(np.asarray(params["b_ltr"]).reshape(-1)[0])

    # word-level attention block bias [NN, NL]
    cp[ROW_WB16:ROW_WB16 + NN, :NL] = NEG
    for n in range(NN):
        cp[ROW_WB16 + n, n * L:(n + 1) * L] = 0.0

    # RBF constant rows (two kernels packed per row: lanes 0:64 / 64:128)
    mus = (-0.9 + 0.1 * np.arange(K)).astype(np.float32)
    sig = np.full((K,), 0.1, np.float32)
    sig[K - 1] = 0.001
    neg_a = (-1.0 / (2.0 * sig * sig)).astype(np.float32)
    w_ltr = np.asarray(params["w_ltr"]).reshape(K)
    for t in range(T):
        cp[ROW_MU + t, :CW] = mus[2 * t]
        cp[ROW_MU + t, CW:] = mus[2 * t + 1]
        cp[ROW_NA + t, :CW] = neg_a[2 * t]
        cp[ROW_NA + t, CW:] = neg_a[2 * t + 1]
        cp[ROW_W + t, :CW] = w_ltr[2 * t]
        cp[ROW_W + t, CW:] = w_ltr[2 * t + 1]

    wq = np.asarray(params["wq"])                     # [H, E, E], used as x @ wq[h]
    wv = np.asarray(params["wv"])                     # [H, E, VD]
    for h in range(H):
        cp[ROW_WQ + h * E:ROW_WQ + (h + 1) * E, :E] = wq[h] * INV_SQRT_E
        cp[ROW_WVP + h * E:ROW_WVP + (h + 1) * E, h * VD:(h + 1) * VD] = wv[h]
    cp[ROW_WK:ROW_WK + REPR, :QD] = np.asarray(params["wk_t"])

    # word-row -> candidate-pair indicator (rows 0:64 double as the his-word version)
    for j in range(NL):
        cp[ROW_BLK2 + j, (j % CW) // L] = 1.0

    # self-attention block-diagonal bias [NL, NL]
    cp[ROW_NB:ROW_NB + NL, :NL] = NEG
    for n in range(NN):
        cp[ROW_NB + n * L:ROW_NB + (n + 1) * L, n * L:(n + 1) * L] = 0.0

    return jnp.asarray(cp)


# ----------------------------------- forward -----------------------------------
def gca_forward(embedding, cpack, candidate_title, clicked_title, click_mask, gumbel_key):
    cdd_org = embedding[candidate_title]                              # [B, CDD, L, E]
    his_org = embedding[clicked_title]                                # [B, HIS, L, E]
    # TODO(synk): nn.Dropout omitted (inference-mode identity).
    x_all = jnp.concatenate([cdd_org.reshape(CW, E),
                             his_org.reshape(HW, E)], axis=0)         # [128, 32]

    # gumbel noise -log(-log(U)) on valid (same-batch, unmasked) slots, -1e30 elsewhere
    u = jax.random.uniform(gumbel_key, (B, CDD, HIS),
                           minval=1e-6, maxval=1.0 - 1e-6, dtype=jnp.float32)
    gum = -jnp.log(-jnp.log(u))
    valid = jnp.logical_not(click_mask.reshape(B, 1, HIS))
    blockvals = jnp.where(valid, gum, NEG)
    nbn = jnp.full((NCDD, NHIS), NEG, jnp.float32)
    for b in range(B):
        nbn = nbn.at[b * CDD:(b + 1) * CDD, b * HIS:(b + 1) * HIS].set(blockvals[b])

    scores = pl.pallas_call(
        gca_fused_kernel,
        out_shape=jax.ShapeDtypeStruct((1, NCDD), jnp.float32),
        grid_spec=pltpu.PrefetchScalarGridSpec(
            num_scalar_prefetch=0,
            grid=(1,),
            in_specs=[
                pl.BlockSpec((NL, E), lambda i: (0, 0)),
                pl.BlockSpec((CROWS, 128), lambda i: (0, 0)),
                pl.BlockSpec((NCDD, NHIS), lambda i: (0, 0)),
            ],
            out_specs=pl.BlockSpec((1, NCDD), lambda i: (0, 0)),
        ),
        compiler_params=pltpu.CompilerParams(dimension_semantics=("arbitrary",)),
    )(x_all, cpack, nbn)

    score = scores.reshape(B, CDD)
    return jax.nn.log_softmax(score, axis=-1)                         # cdd_size > 1 branch


# ----------------------------------- main -----------------------------------
if __name__ == "__main__":
    root = jax.random.PRNGKey(0)
    keys = jax.random.split(root, 10)

    params = {
        "embedding": jax.random.normal(keys[0], (VOCAB, E), jnp.float32),
        # Linear weights stored pre-transposed so the kernel does x @ W directly.
        "wq": 0.1 * jax.random.normal(keys[1], (H, E, E), jnp.float32),
        "wv": 0.1 * jax.random.normal(keys[2], (H, E, VD), jnp.float32),
        "wk_t": 0.1 * jax.random.normal(keys[3], (REPR, QD), jnp.float32),
        "bk": 0.1 * jax.random.normal(keys[4], (QD,), jnp.float32),
        "qw": jax.random.normal(keys[5], (QD,), jnp.float32),          # query_words
        "w_ltr": 0.1 * jax.random.normal(keys[6], (K,), jnp.float32),
        "b_ltr": 0.1 * jax.random.normal(keys[7], (1,), jnp.float32),
    }
    cpack = pack_constants(params)                                     # one-time, host side

    candidate_title = jax.random.randint(keys[8], (B, CDD, L), 0, VOCAB, jnp.int32)
    clicked_title = jax.random.randint(keys[9], (B, HIS, L), 0, VOCAB, jnp.int32)
    # mask out the last history slot for every batch element (True == masked)
    click_mask = jnp.zeros((B, HIS, 1), dtype=jnp.bool_).at[:, -1, :].set(True)
    gumbel_key = jax.random.PRNGKey(42)

    forward = jax.jit(gca_forward)
    out = forward(params["embedding"], cpack, candidate_title, clicked_title,
                  click_mask, gumbel_key)
    out = jax.block_until_ready(out)
    assert out.shape == (B, CDD)
    assert bool(jnp.all(jnp.isfinite(out)))
    print("KERNEL_OK")
</pallas_src>

<mosaic_0001>
module attributes {stable_mosaic.version = 11 : i64} {
  func.func @gca_fused_kernel(%arg0: i32, %arg1: memref<128x32xf32, #tpu.memory_space<vmem>>, %arg2: memref<488x128xf32, #tpu.memory_space<vmem>>, %arg3: memref<8x8xf32, #tpu.memory_space<vmem>>, %arg4: memref<1x8xf32, #tpu.memory_space<vmem>>) attributes {dimension_semantics = [#tpu.dimension_semantics<arbitrary>], iteration_bounds = array<i64: 1>, scalar_prefetch = 0 : i64, scratch_operands = 0 : i64, tpu.core_type = #tpu.core_type<tc>, window_params = [{pipeline_mode = #tpu.pipeline_mode<synchronous>, transform_indices = @transform_0, window_bounds = array<i64: 128, 32>}, {pipeline_mode = #tpu.pipeline_mode<synchronous>, transform_indices = @transform_1, window_bounds = array<i64: 488, 128>}, {pipeline_mode = #tpu.pipeline_mode<synchronous>, transform_indices = @transform_2, window_bounds = array<i64: 8, 8>}, {pipeline_mode = #tpu.pipeline_mode<synchronous>, transform_indices = @transform_3, window_bounds = array<i64: 1, 8>}]} {
    %c0 = arith.constant 0 : index
    %c0_0 = arith.constant 0 : index
    %0 = vector.load %arg1[%c0, %c0_0] : memref<128x32xf32, #tpu.memory_space<vmem>>, vector<128x32xf32>
    %1 = arith.mulf %0, %0 : vector<128x32xf32>
    %cst = arith.constant dense<0.000000e+00> : vector<128xf32>
    %2 = vector.multi_reduction <add>, %1, %cst [1] : vector<128x32xf32> to vector<128xf32>
    %3 = vector.shape_cast %2 : vector<128xf32> to vector<128x1xf32>
    %cst_1 = arith.constant 1.000000e-16 : f32
    %4 = vector.broadcast %cst_1 : f32 to vector<128x1xf32>
    %5 = arith.maximumf %3, %4 : vector<128x1xf32>
    %6 = math.rsqrt %5 : vector<128x1xf32>
    %7 = vector.broadcast %6 : vector<128x1xf32> to vector<128x32xf32>
    %8 = arith.mulf %0, %7 : vector<128x32xf32>
    %cst_2 = arith.constant 0.000000e+00 : f32
    %9 = vector.broadcast %cst_2 : f32 to vector<128x32xf32>
    %c72 = arith.constant 72 : index
    %c0_3 = arith.constant 0 : index
    %10 = vector.load %arg2[%c72, %c0_3] : memref<488x128xf32, #tpu.memory_space<vmem>>, vector<32x32xf32>
    %cst_4 = arith.constant dense<0.000000e+00> : vector<128x32xf32>
    %11 = tpu.matmul %0, %10, %cst_4 {dimension_numbers = #tpu.dot_dimension_numbers<[1], [0], [0], [1], [0, 0, 1, 1], [], []>} : vector<128x32xf32>, vector<32x32xf32>, vector<128x32xf32> -> vector<128x32xf32>
    %cst_5 = arith.constant dense<0.000000e+00> : vector<128x128xf32>
    %12 = tpu.matmul %11, %0, %cst_5 {dimension_numbers = #tpu.dot_dimension_numbers<[1], [1], [0], [0], [0, 0, 1, 0], [], []>} : vector<128x32xf32>, vector<128x32xf32>, vector<128x128xf32> -> vector<128x128xf32>
    %c360 = arith.constant 360 : index
    %c0_6 = arith.constant 0 : index
    %13 = vector.load %arg2[%c360, %c0_6] : memref<488x128xf32, #tpu.memory_space<vmem>>, vector<128x128xf32>
    %14 = arith.addf %12, %13 : vector<128x128xf32>
    %cst_7 = arith.constant dense<0xFF800000> : vector<128xf32>
    %15 = vector.multi_reduction <maximumf>, %14, %cst_7 [1] : vector<128x128xf32> to vector<128xf32>
    %16 = vector.shape_cast %15 : vector<128xf32> to vector<128x1xf32>
    %17 = vector.broadcast %16 : vector<128x1xf32> to vector<128x128xf32>
    %18 = arith.subf %14, %17 : vector<128x128xf32>
    %19 = math.exp %18 : vector<128x128xf32>
    %cst_8 = arith.constant dense<0.000000e+00> : vector<128xf32>
    %20 = vector.multi_reduction <add>, %19, %cst_8 [1] : vector<128x128xf32> to vector<128xf32>
    %21 = vector.shape_cast %20 : vector<128xf32> to vector<128x1xf32>
    %22 = tpu.reciprocal %21 {approx = true} : vector<128x1xf32> -> vector<128x1xf32>
    %23 = vector.broadcast %22 : vector<128x1xf32> to vector<128x128xf32>
    %24 = arith.mulf %19, %23 : vector<128x128xf32>
    %cst_9 = arith.constant dense<0.000000e+00> : vector<128x32xf32>
    %25 = tpu.matmul %24, %0, %cst_9 {dimension_numbers = #tpu.dot_dimension_numbers<[1], [0], [0], [1], [0, 0, 1, 1], [], []>} : vector<128x128xf32>, vector<128x32xf32>, vector<128x32xf32> -> vector<128x32xf32>
    %c136 = arith.constant 136 : index
    %c0_10 = arith.constant 0 : index
    %26 = vector.load %arg2[%c136, %c0_10] : memref<488x128xf32, #tpu.memory_space<vmem>>, vector<32x32xf32>
    %cst_11 = arith.constant dense<0.000000e+00> : vector<128x32xf32>
    %27 = tpu.matmul %25, %26, %cst_11 {dimension_numbers = #tpu.dot_dimension_numbers<[1], [0], [0], [1], [0, 0, 1, 1], [], []>} : vector<128x32xf32>, vector<32x32xf32>, vector<128x32xf32> -> vector<128x32xf32>
    %28 = arith.addf %9, %27 : vector<128x32xf32>
    %c104 = arith.constant 104 : index
    %c0_12 = arith.constant 0 : index
    %29 = vector.load %arg2[%c104, %c0_12] : memref<488x128xf32, #tpu.memory_space<vmem>>, vector<32x32xf32>
    %cst_13 = arith.constant dense<0.000000e+00> : vector<128x32xf32>
    %30 = tpu.matmul %0, %29, %cst_13 {dimension_numbers = #tpu.dot_dimension_numbers<[1], [0], [0], [1], [0, 0, 1, 1], [], []>} : vector<128x32xf32>, vector<32x32xf32>, vector<128x32xf32> -> vector<128x32xf32>
    %cst_14 = arith.constant dense<0.000000e+00> : vector<128x128xf32>
    %31 = tpu.matmul %30, %0, %cst_14 {dimension_numbers = #tpu.dot_dimension_numbers<[1], [1], [0], [0], [0, 0, 1, 0], [], []>} : vector<128x32xf32>, vector<128x32xf32>, vector<128x128xf32> -> vector<128x128xf32>
    %c360_15 = arith.constant 360 : index
    %c0_16 = arith.constant 0 : index
    %32 = vector.load %arg2[%c360_15, %c0_16] : memref<488x128xf32, #tpu.memory_space<vmem>>, vector<128x128xf32>
    %33 = arith.addf %31, %32 : vector<128x128xf32>
    %cst_17 = arith.constant dense<0xFF800000> : vector<128xf32>
    %34 = vector.multi_reduction <maximumf>, %33, %cst_17 [1] : vector<128x128xf32> to vector<128xf32>
    %35 = vector.shape_cast %34 : vector<128xf32> to vector<128x1xf32>
    %36 = vector.broadcast %35 : vector<128x1xf32> to vector<128x128xf32>
    %37 = arith.subf %33, %36 : vector<128x128xf32>
    %38 = math.exp %37 : vector<128x128xf32>
    %cst_18 = arith.constant dense<0.000000e+00> : vector<128xf32>
    %39 = vector.multi_reduction <add>, %38, %cst_18 [1] : vector<128x128xf32> to vector<128xf32>
    %40 = vector.shape_cast %39 : vector<128xf32> to vector<128x1xf32>
    %41 = tpu.reciprocal %40 {approx = true} : vector<128x1xf32> -> vector<128x1xf32>
    %42 = vector.broadcast %41 : vector<128x1xf32> to vector<128x128xf32>
    %43 = arith.mulf %38, %42 : vector<128x128xf32>
    %cst_19 = arith.constant dense<0.000000e+00> : vector<128x32xf32>
    %44 = tpu.matmul %43, %0, %cst_19 {dimension_numbers = #tpu.dot_dimension_numbers<[1], [0], [0], [1], [0, 0, 1, 1], [], []>} : vector<128x128xf32>, vector<128x32xf32>, vector<128x32xf32> -> vector<128x32xf32>
    %c168 = arith.constant 168 : index
    %c0_20 = arith.constant 0 : index
    %45 = vector.load %arg2[%c168, %c0_20] : memref<488x128xf32, #tpu.memory_space<vmem>>, vector<32x32xf32>
    %cst_21 = arith.constant dense<0.000000e+00> : vector<128x32xf32>
    %46 = tpu.matmul %44, %45, %cst_21 {dimension_numbers = #tpu.dot_dimension_numbers<[1], [0], [0], [1], [0, 0, 1, 1], [], []>} : vector<128x32xf32>, vector<32x32xf32>, vector<128x32xf32> -> vector<128x32xf32>
    %47 = arith.addf %28, %46 : vector<128x32xf32>
    %c200 = arith.constant 200 : index
    %c0_22 = arith.constant 0 : index
    %48 = vector.load %arg2[%c200, %c0_22] : memref<488x128xf32, #tpu.memory_space<vmem>>, vector<32x16xf32>
    %c0_23 = arith.constant 0 : index
    %c0_24 = arith.constant 0 : index
    %49 = vector.load %arg2[%c0_23, %c0_24] : memref<488x128xf32, #tpu.memory_space<vmem>>, vector<1x16xf32>
    %cst_25 = arith.constant dense<0.000000e+00> : vector<128x16xf32>
    %50 = tpu.matmul %47, %48, %cst_25 {dimension_numbers = #tpu.dot_dimension_numbers<[1], [0], [0], [1], [0, 0, 1, 1], [], []>} : vector<128x32xf32>, vector<32x16xf32>, vector<128x16xf32> -> vector<128x16xf32>
    %51 = vector.broadcast %49 : vector<1x16xf32> to vector<128x16xf32>
    %52 = arith.addf %50, %51 : vector<128x16xf32>
    %53 = math.tanh %52 : vector<128x16xf32>
    %c1 = arith.constant 1 : index
    %c0_26 = arith.constant 0 : index
    %54 = vector.load %arg2[%c1, %c0_26] : memref<488x128xf32, #tpu.memory_space<vmem>>, vector<1x16xf32>
    %cst_27 = arith.constant dense<0.000000e+00> : vector<1x128xf32>
    %55 = tpu.matmul %54, %53, %cst_27 {dimension_numbers = #tpu.dot_dimension_numbers<[1], [1], [0], [0], [0, 0, 1, 0], [], []>} : vector<1x16xf32>, vector<128x16xf32>, vector<1x128xf32> -> vector<1x128xf32>
    %c8 = arith.constant 8 : index
    %c0_28 = arith.constant 0 : index
    %56 = vector.load %arg2[%c8, %c0_28] : memref<488x128xf32, #tpu.memory_space<vmem>>, vector<16x128xf32>
    %57 = vector.broadcast %55 : vector<1x128xf32> to vector<16x128xf32>
    %58 = arith.addf %57, %56 : vector<16x128xf32>
    %cst_29 = arith.constant dense<0xFF800000> : vector<16xf32>
    %59 = vector.multi_reduction <maximumf>, %58, %cst_29 [1] : vector<16x128xf32> to vector<16xf32>
    %60 = vector.shape_cast %59 : vector<16xf32> to vector<16x1xf32>
    %61 = vector.broadcast %60 : vector<16x1xf32> to vector<16x128xf32>
    %62 = arith.subf %58, %61 : vector<16x128xf32>
    %63 = math.exp %62 : vector<16x128xf32>
    %cst_30 = arith.constant dense<0.000000e+00> : vector<16xf32>
    %64 = vector.multi_reduction <add>, %63, %cst_30 [1] : vector<16x128xf32> to vector<16xf32>
    %65 = vector.shape_cast %64 : vector<16xf32> to vector<16x1xf32>
    %66 = tpu.reciprocal %65 {approx = true} : vector<16x1xf32> -> vector<16x1xf32>
    %67 = vector.broadcast %66 : vector<16x1xf32> to vector<16x128xf32>
    %68 = arith.mulf %63, %67 : vector<16x128xf32>
    %cst_31 = arith.constant dense<0.000000e+00> : vector<16x32xf32>
    %69 = tpu.matmul %68, %47, %cst_31 {dimension_numbers = #tpu.dot_dimension_numbers<[1], [0], [0], [1], [0, 0, 1, 1], [], []>} : vector<16x128xf32>, vector<128x32xf32>, vector<16x32xf32> -> vector<16x32xf32>
    %70 = vector.extract_strided_slice %69 {offsets = [0, 0], sizes = [8, 32], strides = [1, 1]} : vector<16x32xf32> to vector<8x32xf32>
    %71 = vector.extract_strided_slice %69 {offsets = [8, 0], sizes = [8, 32], strides = [1, 1]} : vector<16x32xf32> to vector<8x32xf32>
    %cst_32 = arith.constant dense<0.000000e+00> : vector<8x8xf32>
    %72 = tpu.matmul %70, %71, %cst_32 {dimension_numbers = #tpu.dot_dimension_numbers<[1], [1], [0], [0], [0, 0, 1, 0], [], []>} : vector<8x32xf32>, vector<8x32xf32>, vector<8x8xf32> -> vector<8x8xf32>
    %c0_33 = arith.constant 0 : index
    %c0_34 = arith.constant 0 : index
    %73 = vector.load %arg3[%c0_33, %c0_34] : memref<8x8xf32, #tpu.memory_space<vmem>>, vector<8x8xf32>
    %74 = arith.addf %72, %73 : vector<8x8xf32>
    %cst_35 = arith.constant dense<0xFF800000> : vector<8xf32>
    %75 = vector.multi_reduction <maximumf>, %74, %cst_35 [1] : vector<8x8xf32> to vector<8xf32>
    %76 = vector.shape_cast %75 : vector<8xf32> to vector<8x1xf32>
    %77 = tpu.iota {dimensions = array<i32: 1>} : vector<8x8xi32>
    %78 = vector.broadcast %76 : vector<8x1xf32> to vector<8x8xf32>
    %79 = arith.cmpf oeq, %74, %78 : vector<8x8xf32>
    %c8_i32 = arith.constant 8 : i32
    %80 = vector.broadcast %c8_i32 : i32 to vector<8x8xi32>
    %81 = arith.select %79, %77, %80 : vector<8x8xi1>, vector<8x8xi32>
    %cst_36 = arith.constant dense<2147483647> : vector<8xi32>
    %82 = vector.multi_reduction <minsi>, %81, %cst_36 [1] : vector<8x8xi32> to vector<8xi32>
    %83 = vector.shape_cast %82 : vector<8xi32> to vector<8x1xi32>
    %84 = vector.broadcast %83 : vector<8x1xi32> to vector<8x8xi32>
    %85 = arith.cmpi eq, %77, %84 : vector<8x8xi32>
    %86 = arith.extui %85 : vector<8x8xi1> to vector<8x8xi32>
    %87 = arith.sitofp %86 : vector<8x8xi32> to vector<8x8xf32>
    %c232 = arith.constant 232 : index
    %c0_37 = arith.constant 0 : index
    %88 = vector.load %arg2[%c232, %c0_37] : memref<488x128xf32, #tpu.memory_space<vmem>>, vector<64x8xf32>
    %c232_38 = arith.constant 232 : index
    %c0_39 = arith.constant 0 : index
    %89 = vector.load %arg2[%c232_38, %c0_39] : memref<488x128xf32, #tpu.memory_space<vmem>>, vector<128x8xf32>
    %cst_40 = arith.constant dense<0.000000e+00> : vector<64x8xf32>
    %90 = tpu.matmul %88, %87, %cst_40 {dimension_numbers = #tpu.dot_dimension_numbers<[1], [1], [0], [0], [0, 0, 1, 0], [], []>} : vector<64x8xf32>, vector<8x8xf32>, vector<64x8xf32> -> vector<64x8xf32>
    %cst_41 = arith.constant dense<0.000000e+00> : vector<64x128xf32>
    %91 = tpu.matmul %90, %89, %cst_41 {dimension_numbers = #tpu.dot_dimension_numbers<[1], [1], [0], [0], [0, 0, 1, 0], [], []>} : vector<64x8xf32>, vector<128x8xf32>, vector<64x128xf32> -> vector<64x128xf32>
    %92 = vector.extract_strided_slice %8 {offsets = [0, 0], sizes = [64, 32], strides = [1, 1]} : vector<128x32xf32> to vector<64x32xf32>
    %93 = vector.extract_strided_slice %8 {offsets = [0, 0], sizes = [64, 32], strides = [1, 1]} : vector<128x32xf32> to vector<64x32xf32>
    %94 = tpu.concatenate %92, %93 in 0 : vector<64x32xf32>, vector<64x32xf32> -> vector<128x32xf32>
    %95 = vector.extract_strided_slice %8 {offsets = [64, 0], sizes = [64, 32], strides = [1, 1]} : vector<128x32xf32> to vector<64x32xf32>
    %cst_42 = arith.constant dense<0.000000e+00> : vector<64x128xf32>
    %96 = tpu.matmul %95, %94, %cst_42 {dimension_numbers = #tpu.dot_dimension_numbers<[1], [1], [0], [0], [0, 0, 1, 0], [], []>} : vector<64x32xf32>, vector<128x32xf32>, vector<64x128xf32> -> vector<64x128xf32>
    %cst_43 = arith.constant 1.000000e+04 : f32
    %97 = vector.broadcast %cst_43 : f32 to vector<64x128xf32>
    %98 = arith.subf %96, %97 : vector<64x128xf32>
    %99 = arith.mulf %91, %98 : vector<64x128xf32>
    %cst_44 = arith.constant 1.000000e+04 : f32
    %100 = vector.broadcast %cst_44 : f32 to vector<64x128xf32>
    %101 = arith.addf %99, %100 : vector<64x128xf32>
    %cst_45 = arith.constant 0.000000e+00 : f32
    %102 = vector.broadcast %cst_45 : f32 to vector<1x128xf32>
    %c24 = arith.constant 24 : index
    %c0_46 = arith.constant 0 : index
    %103 = vector.load %arg2[%c24, %c0_46] : memref<488x128xf32, #tpu.memory_space<vmem>>, vector<1x128xf32>
    %c40 = arith.constant 40 : index
    %c0_47 = arith.constant 0 : index
    %104 = vector.load %arg2[%c40, %c0_47] : memref<488x128xf32, #tpu.memory_space<vmem>>, vector<1x128xf32>
    %c56 = arith.constant 56 : index
    %c0_48 = arith.constant 0 : index
    %105 = vector.load %arg2[%c56, %c0_48] : memref<488x128xf32, #tpu.memory_space<vmem>>, vector<1x128xf32>
    %106 = vector.broadcast %103 : vector<1x128xf32> to vector<64x128xf32>
    %107 = arith.subf %101, %106 : vector<64x128xf32>
    %108 = arith.mulf %107, %107 : vector<64x128xf32>
    %109 = vector.broadcast %104 : vector<1x128xf32> to vector<64x128xf32>
    %110 = arith.mulf %108, %109 : vector<64x128xf32>
    %111 = math.exp %110 : vector<64x128xf32>
    %cst_49 = arith.constant dense<0.000000e+00> : vector<128xf32>
    %112 = vector.multi_reduction <add>, %111, %cst_49 [0] : vector<64x128xf32> to vector<128xf32>
    %113 = vector.shape_cast %112 : vector<128xf32> to vector<1x128xf32>
    %cst_50 = arith.constant 1.000000e-10 : f32
    %114 = vector.broadcast %cst_50 : f32 to vector<1x128xf32>
    %115 = arith.maximumf %113, %114 : vector<1x128xf32>
    %116 = math.log %115 : vector<1x128xf32>
    %117 = arith.mulf %105, %116 : vector<1x128xf32>
    %118 = arith.addf %102, %117 : vector<1x128xf32>
    %c25 = arith.constant 25 : index
    %c0_51 = arith.constant 0 : index
    %119 = vector.load %arg2[%c25, %c0_51] : memref<488x128xf32, #tpu.memory_space<vmem>>, vector<1x128xf32>
    %c41 = arith.constant 41 : index
    %c0_52 = arith.constant 0 : index
    %120 = vector.load %arg2[%c41, %c0_52] : memref<488x128xf32, #tpu.memory_space<vmem>>, vector<1x128xf32>
    %c57 = arith.constant 57 : index
    %c0_53 = arith.constant 0 : index
    %121 = vector.load %arg2[%c57, %c0_53] : memref<488x128xf32, #tpu.memory_space<vmem>>, vector<1x128xf32>
    %122 = vector.broadcast %119 : vector<1x128xf32> to vector<64x128xf32>
    %123 = arith.subf %101, %122 : vector<64x128xf32>
    %124 = arith.mulf %123, %123 : vector<64x128xf32>
    %125 = vector.broadcast %120 : vector<1x128xf32> to vector<64x128xf32>
    %126 = arith.mulf %124, %125 : vector<64x128xf32>
    %127 = math.exp %126 : vector<64x128xf32>
    %cst_54 = arith.constant dense<0.000000e+00> : vector<128xf32>
    %128 = vector.multi_reduction <add>, %127, %cst_54 [0] : vector<64x128xf32> to vector<128xf32>
    %129 = vector.shape_cast %128 : vector<128xf32> to vector<1x128xf32>
    %cst_55 = arith.constant 1.000000e-10 : f32
    %130 = vector.broadcast %cst_55 : f32 to vector<1x128xf32>
    %131 = arith.maximumf %129, %130 : vector<1x128xf32>
    %132 = math.log %131 : vector<1x128xf32>
    %133 = arith.mulf %121, %132 : vector<1x128xf32>
    %134 = arith.addf %118, %133 : vector<1x128xf32>
    %c26 = arith.constant 26 : index
    %c0_56 = arith.constant 0 : index
    %135 = vector.load %arg2[%c26, %c0_56] : memref<488x128xf32, #tpu.memory_space<vmem>>, vector<1x128xf32>
    %c42 = arith.constant 42 : index
    %c0_57 = arith.constant 0 : index
    %136 = vector.load %arg2[%c42, %c0_57] : memref<488x128xf32, #tpu.memory_space<vmem>>, vector<1x128xf32>
    %c58 = arith.constant 58 : index
    %c0_58 = arith.constant 0 : index
    %137 = vector.load %arg2[%c58, %c0_58] : memref<488x128xf32, #tpu.memory_space<vmem>>, vector<1x128xf32>
    %138 = vector.broadcast %135 : vector<1x128xf32> to vector<64x128xf32>
    %139 = arith.subf %101, %138 : vector<64x128xf32>
    %140 = arith.mulf %139, %139 : vector<64x128xf32>
    %141 = vector.broadcast %136 : vector<1x128xf32> to vector<64x128xf32>
    %142 = arith.mulf %140, %141 : vector<64x128xf32>
    %143 = math.exp %142 : vector<64x128xf32>
    %cst_59 = arith.constant dense<0.000000e+00> : vector<128xf32>
    %144 = vector.multi_reduction <add>, %143, %cst_59 [0] : vector<64x128xf32> to vector<128xf32>
    %145 = vector.shape_cast %144 : vector<128xf32> to vector<1x128xf32>
    %cst_60 = arith.constant 1.000000e-10 : f32
    %146 = vector.broadcast %cst_60 : f32 to vector<1x128xf32>
    %147 = arith.maximumf %145, %146 : vector<1x128xf32>
    %148 = math.log %147 : vector<1x128xf32>
    %149 = arith.mulf %137, %148 : vector<1x128xf32>
    %150 = arith.addf %134, %149 : vector<1x128xf32>
    %c27 = arith.constant 27 : index
    %c0_61 = arith.constant 0 : index
    %151 = vector.load %arg2[%c27, %c0_61] : memref<488x128xf32, #tpu.memory_space<vmem>>, vector<1x128xf32>
    %c43 = arith.constant 43 : index
    %c0_62 = arith.constant 0 : index
    %152 = vector.load %arg2[%c43, %c0_62] : memref<488x128xf32, #tpu.memory_space<vmem>>, vector<1x128xf32>
    %c59 = arith.constant 59 : index
    %c0_63 = arith.constant 0 : index
    %153 = vector.load %arg2[%c59, %c0_63] : memref<488x128xf32, #tpu.memory_space<vmem>>, vector<1x128xf32>
    %154 = vector.broadcast %151 : vector<1x128xf32> to vector<64x128xf32>
    %155 = arith.subf %101, %154 : vector<64x128xf32>
    %156 = arith.mulf %155, %155 : vector<64x128xf32>
    %157 = vector.broadcast %152 : vector<1x128xf32> to vector<64x128xf32>
    %158 = arith.mulf %156, %157 : vector<64x128xf32>
    %159 = math.exp %158 : vector<64x128xf32>
    %cst_64 = arith.constant dense<0.000000e+00> : vector<128xf32>
    %160 = vector.multi_reduction <add>, %159, %cst_64 [0] : vector<64x128xf32> to vector<128xf32>
    %161 = vector.shape_cast %160 : vector<128xf32> to vector<1x128xf32>
    %cst_65 = arith.constant 1.000000e-10 : f32
    %162 = vector.broadcast %cst_65 : f32 to vector<1x128xf32>
    %163 = arith.maximumf %161, %162 : vector<1x128xf32>
    %164 = math.log %163 : vector<1x128xf32>
    %165 = arith.mulf %153, %164 : vector<1x128xf32>
    %166 = arith.addf %150, %165 : vector<1x128xf32>
    %c28 = arith.constant 28 : index
    %c0_66 = arith.constant 0 : index
    %167 = vector.load %arg2[%c28, %c0_66] : memref<488x128xf32, #tpu.memory_space<vmem>>, vector<1x128xf32>
    %c44 = arith.constant 44 : index
    %c0_67 = arith.constant 0 : index
    %168 = vector.load %arg2[%c44, %c0_67] : memref<488x128xf32, #tpu.memory_space<vmem>>, vector<1x128xf32>
    %c60 = arith.constant 60 : index
    %c0_68 = arith.constant 0 : index
    %169 = vector.load %arg2[%c60, %c0_68] : memref<488x128xf32, #tpu.memory_space<vmem>>, vector<1x128xf32>
    %170 = vector.broadcast %167 : vector<1x128xf32> to vector<64x128xf32>
    %171 = arith.subf %101, %170 : vector<64x128xf32>
    %172 = arith.mulf %171, %171 : vector<64x128xf32>
    %173 = vector.broadcast %168 : vector<1x128xf32> to vector<64x128xf32>
    %174 = arith.mulf %172, %173 : vector<64x128xf32>
    %175 = math.exp %174 : vector<64x128xf32>
    %cst_69 = arith.constant dense<0.000000e+00> : vector<128xf32>
    %176 = vector.multi_reduction <add>, %175, %cst_69 [0] : vector<64x128xf32> to vector<128xf32>
    %177 = vector.shape_cast %176 : vector<128xf32> to vector<1x128xf32>
    %cst_70 = arith.constant 1.000000e-10 : f32
    %178 = vector.broadcast %cst_70 : f32 to vector<1x128xf32>
    %179 = arith.maximumf %177, %178 : vector<1x128xf32>
    %180 = math.log %179 : vector<1x128xf32>
    %181 = arith.mulf %169, %180 : vector<1x128xf32>
    %182 = arith.addf %166, %181 : vector<1x128xf32>
    %c29 = arith.constant 29 : index
    %c0_71 = arith.constant 0 : index
    %183 = vector.load %arg2[%c29, %c0_71] : memref<488x128xf32, #tpu.memory_space<vmem>>, vector<1x128xf32>
    %c45 = arith.constant 45 : index
    %c0_72 = arith.constant 0 : index
    %184 = vector.load %arg2[%c45, %c0_72] : memref<488x128xf32, #tpu.memory_space<vmem>>, vector<1x128xf32>
    %c61 = arith.constant 61 : index
    %c0_73 = arith.constant 0 : index
    %185 = vector.load %arg2[%c61, %c0_73] : memref<488x128xf32, #tpu.memory_space<vmem>>, vector<1x128xf32>
    %186 = vector.broadcast %183 : vector<1x128xf32> to vector<64x128xf32>
    %187 = arith.subf %101, %186 : vector<64x128xf32>
    %188 = arith.mulf %187, %187 : vector<64x128xf32>
    %189 = vector.broadcast %184 : vector<1x128xf32> to vector<64x128xf32>
    %190 = arith.mulf %188, %189 : vector<64x128xf32>
    %191 = math.exp %190 : vector<64x128xf32>
    %cst_74 = arith.constant dense<0.000000e+00> : vector<128xf32>
    %192 = vector.multi_reduction <add>, %191, %cst_74 [0] : vector<64x128xf32> to vector<128xf32>
    %193 = vector.shape_cast %192 : vector<128xf32> to vector<1x128xf32>
    %cst_75 = arith.constant 1.000000e-10 : f32
    %194 = vector.broadcast %cst_75 : f32 to vector<1x128xf32>
    %195 = arith.maximumf %193, %194 : vector<1x128xf32>
    %196 = math.log %195 : vector<1x128xf32>
    %197 = arith.mulf %185, %196 : vector<1x128xf32>
    %198 = arith.addf %182, %197 : vector<1x128xf32>
    %c30 = arith.constant 30 : index
    %c0_76 = arith.constant 0 : index
    %199 = vector.load %arg2[%c30, %c0_76] : memref<488x128xf32, #tpu.memory_space<vmem>>, vector<1x128xf32>
    %c46 = arith.constant 46 : index
    %c0_77 = arith.constant 0 : index
    %200 = vector.load %arg2[%c46, %c0_77] : memref<488x128xf32, #tpu.memory_space<vmem>>, vector<1x128xf32>
    %c62 = arith.constant 62 : index
    %c0_78 = arith.constant 0 : index
    %201 = vector.load %arg2[%c62, %c0_78] : memref<488x128xf32, #tpu.memory_space<vmem>>, vector<1x128xf32>
    %202 = vector.broadcast %199 : vector<1x128xf32> to vector<64x128xf32>
    %203 = arith.subf %101, %202 : vector<64x128xf32>
    %204 = arith.mulf %203, %203 : vector<64x128xf32>
    %205 = vector.broadcast %200 : vector<1x128xf32> to vector<64x128xf32>
    %206 = arith.mulf %204, %205 : vector<64x128xf32>
    %207 = math.exp %206 : vector<64x128xf32>
    %cst_79 = arith.constant dense<0.000000e+00> : vector<128xf32>
    %208 = vector.multi_reduction <add>, %207, %cst_79 [0] : vector<64x128xf32> to vector<128xf32>
    %209 = vector.shape_cast %208 : vector<128xf32> to vector<1x128xf32>
    %cst_80 = arith.constant 1.000000e-10 : f32
    %210 = vector.broadcast %cst_80 : f32 to vector<1x128xf32>
    %211 = arith.maximumf %209, %210 : vector<1x128xf32>
    %212 = math.log %211 : vector<1x128xf32>
    %213 = arith.mulf %201, %212 : vector<1x128xf32>
    %214 = arith.addf %198, %213 : vector<1x128xf32>
    %c31 = arith.constant 31 : index
    %c0_81 = arith.constant 0 : index
    %215 = vector.load %arg2[%c31, %c0_81] : memref<488x128xf32, #tpu.memory_space<vmem>>, vector<1x128xf32>
    %c47 = arith.constant 47 : index
    %c0_82 = arith.constant 0 : index
    %216 = vector.load %arg2[%c47, %c0_82] : memref<488x128xf32, #tpu.memory_space<vmem>>, vector<1x128xf32>
    %c63 = arith.constant 63 : index
    %c0_83 = arith.constant 0 : index
    %217 = vector.load %arg2[%c63, %c0_83] : memref<488x128xf32, #tpu.memory_space<vmem>>, vector<1x128xf32>
    %218 = vector.broadcast %215 : vector<1x128xf32> to vector<64x128xf32>
    %219 = arith.subf %101, %218 : vector<64x128xf32>
    %220 = arith.mulf %219, %219 : vector<64x128xf32>
    %221 = vector.broadcast %216 : vector<1x128xf32> to vector<64x128xf32>
    %222 = arith.mulf %220, %221 : vector<64x128xf32>
    %223 = math.exp %222 : vector<64x128xf32>
    %cst_84 = arith.constant dense<0.000000e+00> : vector<128xf32>
    %224 = vector.multi_reduction <add>, %223, %cst_84 [0] : vector<64x128xf32> to vector<128xf32>
    %225 = vector.shape_cast %224 : vector<128xf32> to vector<1x128xf32>
    %cst_85 = arith.constant 1.000000e-10 : f32
    %226 = vector.broadcast %cst_85 : f32 to vector<1x128xf32>
    %227 = arith.maximumf %225, %226 : vector<1x128xf32>
    %228 = math.log %227 : vector<1x128xf32>
    %229 = arith.mulf %217, %228 : vector<1x128xf32>
    %230 = arith.addf %214, %229 : vector<1x128xf32>
    %c32 = arith.constant 32 : index
    %c0_86 = arith.constant 0 : index
    %231 = vector.load %arg2[%c32, %c0_86] : memref<488x128xf32, #tpu.memory_space<vmem>>, vector<1x128xf32>
    %c48 = arith.constant 48 : index
    %c0_87 = arith.constant 0 : index
    %232 = vector.load %arg2[%c48, %c0_87] : memref<488x128xf32, #tpu.memory_space<vmem>>, vector<1x128xf32>
    %c64 = arith.constant 64 : index
    %c0_88 = arith.constant 0 : index
    %233 = vector.load %arg2[%c64, %c0_88] : memref<488x128xf32, #tpu.memory_space<vmem>>, vector<1x128xf32>
    %234 = vector.broadcast %231 : vector<1x128xf32> to vector<64x128xf32>
    %235 = arith.subf %101, %234 : vector<64x128xf32>
    %236 = arith.mulf %235, %235 : vector<64x128xf32>
    %237 = vector.broadcast %232 : vector<1x128xf32> to vector<64x128xf32>
    %238 = arith.mulf %236, %237 : vector<64x128xf32>
    %239 = math.exp %238 : vector<64x128xf32>
    %cst_89 = arith.constant dense<0.000000e+00> : vector<128xf32>
    %240 = vector.multi_reduction <add>, %239, %cst_89 [0] : vector<64x128xf32> to vector<128xf32>
    %241 = vector.shape_cast %240 : vector<128xf32> to vector<1x128xf32>
    %cst_90 = arith.constant 1.000000e-10 : f32
    %242 = vector.broadcast %cst_90 : f32 to vector<1x128xf32>
    %243 = arith.maximumf %241, %242 : vector<1x128xf32>
    %244 = math.log %243 : vector<1x128xf32>
    %245 = arith.mulf %233, %244 : vector<1x128xf32>
    %246 = arith.addf %230, %245 : vector<1x128xf32>
    %c33 = arith.constant 33 : index
    %c0_91 = arith.constant 0 : index
    %247 = vector.load %arg2[%c33, %c0_91] : memref<488x128xf32, #tpu.memory_space<vmem>>, vector<1x128xf32>
    %c49 = arith.constant 49 : index
    %c0_92 = arith.constant 0 : index
    %248 = vector.load %arg2[%c49, %c0_92] : memref<488x128xf32, #tpu.memory_space<vmem>>, vector<1x128xf32>
    %c65 = arith.constant 65 : index
    %c0_93 = arith.constant 0 : index
    %249 = vector.load %arg2[%c65, %c0_93] : memref<488x128xf32, #tpu.memory_space<vmem>>, vector<1x128xf32>
    %250 = vector.broadcast %247 : vector<1x128xf32> to vector<64x128xf32>
    %251 = arith.subf %101, %250 : vector<64x128xf32>
    %252 = arith.mulf %251, %251 : vector<64x128xf32>
    %253 = vector.broadcast %248 : vector<1x128xf32> to vector<64x128xf32>
    %254 = arith.mulf %252, %253 : vector<64x128xf32>
    %255 = math.exp %254 : vector<64x128xf32>
    %cst_94 = arith.constant dense<0.000000e+00> : vector<128xf32>
    %256 = vector.multi_reduction <add>, %255, %cst_94 [0] : vector<64x128xf32> to vector<128xf32>
    %257 = vector.shape_cast %256 : vector<128xf32> to vector<1x128xf32>
    %cst_95 = arith.constant 1.000000e-10 : f32
    %258 = vector.broadcast %cst_95 : f32 to vector<1x128xf32>
    %259 = arith.maximumf %257, %258 : vector<1x128xf32>
    %260 = math.log %259 : vector<1x128xf32>
    %261 = arith.mulf %249, %260 : vector<1x128xf32>
    %262 = arith.addf %246, %261 : vector<1x128xf32>
    %c2 = arith.constant 2 : index
    %c0_96 = arith.constant 0 : index
    %263 = vector.load %arg2[%c2, %c0_96] : memref<488x128xf32, #tpu.memory_space<vmem>>, vector<1x1xf32>
    %cst_97 = arith.constant dense<0.000000e+00> : vector<1x8xf32>
    %264 = tpu.matmul %262, %89, %cst_97 {dimension_numbers = #tpu.dot_dimension_numbers<[1], [0], [0], [1], [0, 0, 1, 1], [], []>} : vector<1x128xf32>, vector<128x8xf32>, vector<1x8xf32> -> vector<1x8xf32>
    %265 = vector.broadcast %263 : vector<1x1xf32> to vector<1x8xf32>
    %266 = arith.addf %264, %265 : vector<1x8xf32>
    %c0_98 = arith.constant 0 : index
    %c0_99 = arith.constant 0 : index
    %267 = vector.load %arg4[%c0_98, %c0_99] : memref<1x8xf32, #tpu.memory_space<vmem>>, vector<1x8xf32>
    tpu.vector_store %arg4[%c0_98, %c0_99], %266 {strides = array<i32>} : memref<1x8xf32, #tpu.memory_space<vmem>>, vector<1x8xf32>,
    return
  }
  func.func @transform_0(%arg0: i32) -> (i32, i32) {
    %c0_i32 = arith.constant 0 : i32
    %c0_i32_0 = arith.constant 0 : i32
    %c0_i32_1 = arith.constant 0 : i32
    return %c0_i32, %c0_i32_0 : i32, i32
  }
  func.func @transform_1(%arg0: i32) -> (i32, i32) {
    %c0_i32 = arith.constant 0 : i32
    %c0_i32_0 = arith.constant 0 : i32
    %c0_i32_1 = arith.constant 0 : i32
    return %c0_i32, %c0_i32_0 : i32, i32
  }
  func.func @transform_2(%arg0: i32) -> (i32, i32) {
    %c0_i32 = arith.constant 0 : i32
    %c0_i32_0 = arith.constant 0 : i32
    %c0_i32_1 = arith.constant 0 : i32
    return %c0_i32, %c0_i32_0 : i32, i32
  }
  func.func @transform_3(%arg0: i32) -> (i32, i32) {
    %c0_i32 = arith.constant 0 : i32
    %c0_i32_0 = arith.constant 0 : i32
    %c0_i32_1 = arith.constant 0 : i32
    return %c0_i32, %c0_i32_0 : i32, i32
  }
}

</mosaic_0001>

<llo_original>
// kernel: gca_forward.1
$region0: #{gca_forward.1}
  #allocation0 [shape = 'u32[]', space=smem, size = 0x4, offset = 0x4, fixed_abs, tag = 'smem constant byte address 0x4 - core index']
  #allocation1 [shape = 'u32[72,128]{1,0:T(1,128)}', space=vmem, size = 0x9000, scoped, tag = 'internal scratch']
  %s0 = inlined_call_operand.vmem [shape: f32[128,32], index: 0, kind: input, shape index: {}]
  %s1 = inlined_call_operand.vmem [shape: f32[488,128], index: 1, kind: input, shape index: {}]
  %s2 = inlined_call_operand.vmem [shape: f32[8,8], index: 2, kind: input, shape index: {}]
  %s3 = inlined_call_operand.vmem [shape: f32[1,8], index: 3, kind: output, shape index: {}]
  %s4 = sld [smem:[#allocation0]]
  $region22: #{gca_forward.1} parent=0
    _
  %s6 = ssub.s32 1, %s4
  %s7 = scalar_select 0, %s6, %s4
  // Predicated region
  $region2: #{gca_forward.1} parent=0 // pred_check
    _
  $region3: #{gca_forward.1} parent=0 // pred_check_branch
    %9 = sbr.rel (0) target = $region5
  $region4: #{gca_forward.1} parent=0 // pred_region
    _
  $region5: #{gca_forward.1} parent=0 // pred_fallthru
    _
  // Predicated region
  $region6: #{gca_forward.1} parent=0 // pred_check
    _
  $region7: #{gca_forward.1} parent=0 // pred_check_branch
    %11 = sbr.rel (0) target = $region9
  $region8: #{gca_forward.1} parent=0 // pred_region
    _
  $region9: #{gca_forward.1} parent=0 // pred_fallthru
    _
  // Predicated region
  $region10: #{gca_forward.1} parent=0 // pred_check
    _
  $region11: #{gca_forward.1} parent=0 // pred_check_branch
    %13 = sbr.rel (0) target = $region13
  $region12: #{gca_forward.1} parent=0 // pred_region
    _
  $region13: #{gca_forward.1} parent=0 // pred_fallthru
    _
  %v14 = vld [vmem:[%s0] sm:$0xff]
  %v15 = vld [vmem:[%s0 + $0x8] sm:$0xff]
  %v16 = vld [vmem:[%s0 + $0x10] sm:$0xff]
  %v17 = vld [vmem:[%s0 + $0x18] sm:$0xff]
  %v18 = vld [vmem:[%s0 + $0x20] sm:$0xff]
  %v19 = vld [vmem:[%s0 + $0x28] sm:$0xff]
  %v20 = vld [vmem:[%s0 + $0x30] sm:$0xff]
  %v21 = vld [vmem:[%s0 + $0x38] sm:$0xff]
  %v22 = vld [vmem:[%s0 + $0x40] sm:$0xff]
  %v23 = vld [vmem:[%s0 + $0x48] sm:$0xff]
  %v24 = vld [vmem:[%s0 + $0x50] sm:$0xff]
  %v25 = vld [vmem:[%s0 + $0x58] sm:$0xff]
  %v26 = vld [vmem:[%s0 + $0x60] sm:$0xff]
  %v27 = vld [vmem:[%s0 + $0x68] sm:$0xff]
  %v28 = vld [vmem:[%s0 + $0x70] sm:$0xff]
  %v29 = vld [vmem:[%s0 + $0x78] sm:$0xff]
  %v30 = vmul.f32 %v14, %v14
  %v31 = vmul.f32 %v15, %v15
  %v32 = vmul.f32 %v16, %v16
  %v33 = vmul.f32 %v17, %v17
  %v34 = vmul.f32 %v18, %v18
  %v35 = vmul.f32 %v19, %v19
  %v36 = vmul.f32 %v20, %v20
  %v37 = vmul.f32 %v21, %v21
  %v38 = vmul.f32 %v22, %v22
  %v39 = vmul.f32 %v23, %v23
  %v40 = vmul.f32 %v24, %v24
  %v41 = vmul.f32 %v25, %v25
  %v42 = vmul.f32 %v26, %v26
  %v43 = vmul.f32 %v27, %v27
  %v44 = vmul.f32 %v28, %v28
  %v45 = vmul.f32 %v29, %v29
  %vm46 = vcmask 261120
  %v47 = vsel %vm46, %v30, 0.0
  %48 = vadd.xlane.f32.xlu0 %v47
  %v49 = vpop.xlane.xlu0 %48
  %v50 = vsel %vm46, %v31, 0.0
  %51 = vadd.xlane.f32.xlu0 %v50
  %v52 = vpop.xlane.xlu0 %51
  %v53 = vsel %vm46, %v32, 0.0
  %54 = vadd.xlane.f32.xlu0 %v53
  %v55 = vpop.xlane.xlu0 %54
  %v56 = vsel %vm46, %v33, 0.0
  %57 = vadd.xlane.f32.xlu0 %v56
  %v58 = vpop.xlane.xlu0 %57
  %v59 = vsel %vm46, %v34, 0.0
  %60 = vadd.xlane.f32.xlu0 %v59
  %v61 = vpop.xlane.xlu0 %60
  %v62 = vsel %vm46, %v35, 0.0
  %63 = vadd.xlane.f32.xlu0 %v62
  %v64 = vpop.xlane.xlu0 %63
  %v65 = vsel %vm46, %v36, 0.0
  %66 = vadd.xlane.f32.xlu0 %v65
  %v67 = vpop.xlane.xlu0 %66
  %v68 = vsel %vm46, %v37, 0.0
  %69 = vadd.xlane.f32.xlu0 %v68
  %v70 = vpop.xlane.xlu0 %69
  %v71 = vsel %vm46, %v38, 0.0
  %72 = vadd.xlane.f32.xlu0 %v71
  %v73 = vpop.xlane.xlu0 %72
  %v74 = vsel %vm46, %v39, 0.0
  %75 = vadd.xlane.f32.xlu0 %v74
  %v76 = vpop.xlane.xlu0 %75
  %v77 = vsel %vm46, %v40, 0.0
  %78 = vadd.xlane.f32.xlu0 %v77
  %v79 = vpop.xlane.xlu0 %78
  %v80 = vsel %vm46, %v41, 0.0
  %81 = vadd.xlane.f32.xlu0 %v80
  %v82 = vpop.xlane.xlu0 %81
  %v83 = vsel %vm46, %v42, 0.0
  %84 = vadd.xlane.f32.xlu0 %v83
  %v85 = vpop.xlane.xlu0 %84
  %v86 = vsel %vm46, %v43, 0.0
  %87 = vadd.xlane.f32.xlu0 %v86
  %v88 = vpop.xlane.xlu0 %87
  %v89 = vsel %vm46, %v44, 0.0
  %90 = vadd.xlane.f32.xlu0 %v89
  %v91 = vpop.xlane.xlu0 %90
  %v92 = vsel %vm46, %v45, 0.0
  %93 = vadd.xlane.f32.xlu0 %v92
  %v94 = vpop.xlane.xlu0 %93
  %v95 = vmax.f32 %v49, 1e-16
  %v96 = vmax.f32 %v52, 1e-16
  %v97 = vmax.f32 %v55, 1e-16
  %v98 = vmax.f32 %v58, 1e-16
  %v99 = vmax.f32 %v61, 1e-16
  %v100 = vmax.f32 %v64, 1e-16
  %v101 = vmax.f32 %v67, 1e-16
  %v102 = vmax.f32 %v70, 1e-16
  %v103 = vmax.f32 %v73, 1e-16
  %v104 = vmax.f32 %v76, 1e-16
  %v105 = vmax.f32 %v79, 1e-16
  %v106 = vmax.f32 %v82, 1e-16
  %v107 = vmax.f32 %v85, 1e-16
  %v108 = vmax.f32 %v88, 1e-16
  %v109 = vmax.f32 %v91, 1e-16
  %v110 = vmax.f32 %v94, 1e-16
  %v111 = vrsqrt.pop %v95
  %v112 = vmul.f32 %v111, %v95
  %v113 = vmul.f32 %v112, %v111
  %v114 = vmul.f32 0.5, %v113
  %v115 = vsub.f32 1.5, %v114
  %v116 = vmul.f32 %v111, %v115
  %vm117 = vweird.f32 %v95
  %vm118 = vweird.f32 %v111
  %vm119 = vmor %vm117, %vm118
  %v120 = vsel %vm119, %v111, %v116
  %v121 = vrsqrt.pop %v96
  %v122 = vmul.f32 %v121, %v96
  %v123 = vmul.f32 %v122, %v121
  %v124 = vmul.f32 0.5, %v123
  %v125 = vsub.f32 1.5, %v124
  %v126 = vmul.f32 %v121, %v125
  %vm127 = vweird.f32 %v96
  %vm128 = vweird.f32 %v121
  %vm129 = vmor %vm127, %vm128
  %v130 = vsel %vm129, %v121, %v126
  %v131 = vrsqrt.pop %v97
  %v132 = vmul.f32 %v131, %v97
  %v133 = vmul.f32 %v132, %v131
  %v134 = vmul.f32 0.5, %v133
  %v135 = vsub.f32 1.5, %v134
  %v136 = vmul.f32 %v131, %v135
  %vm137 = vweird.f32 %v97
  %vm138 = vweird.f32 %v131
  %vm139 = vmor %vm137, %vm138
  %v140 = vsel %vm139, %v131, %v136
  %v141 = vrsqrt.pop %v98
  %v142 = vmul.f32 %v141, %v98
  %v143 = vmul.f32 %v142, %v141
  %v144 = vmul.f32 0.5, %v143
  %v145 = vsub.f32 1.5, %v144
  %v146 = vmul.f32 %v141, %v145
  %vm147 = vweird.f32 %v98
  %vm148 = vweird.f32 %v141
  %vm149 = vmor %vm147, %vm148
  %v150 = vsel %vm149, %v141, %v146
  %v151 = vrsqrt.pop %v99
  %v152 = vmul.f32 %v151, %v99
  %v153 = vmul.f32 %v152, %v151
  %v154 = vmul.f32 0.5, %v153
  %v155 = vsub.f32 1.5, %v154
  %v156 = vmul.f32 %v151, %v155
  %vm157 = vweird.f32 %v99
  %vm158 = vweird.f32 %v151
  %vm159 = vmor %vm157, %vm158
  %v160 = vsel %vm159, %v151, %v156
  %v161 = vrsqrt.pop %v100
  %v162 = vmul.f32 %v161, %v100
  %v163 = vmul.f32 %v162, %v161
  %v164 = vmul.f32 0.5, %v163
  %v165 = vsub.f32 1.5, %v164
  %v166 = vmul.f32 %v161, %v165
  %vm167 = vweird.f32 %v100
  %vm168 = vweird.f32 %v161
  %vm169 = vmor %vm167, %vm168
  %v170 = vsel %vm169, %v161, %v166
  %v171 = vrsqrt.pop %v101
  %v172 = vmul.f32 %v171, %v101
  %v173 = vmul.f32 %v172, %v171
  %v174 = vmul.f32 0.5, %v173
  %v175 = vsub.f32 1.5, %v174
  %v176 = vmul.f32 %v171, %v175
  %vm177 = vweird.f32 %v101
  %vm178 = vweird.f32 %v171
  %vm179 = vmor %vm177, %vm178
  %v180 = vsel %vm179, %v171, %v176
  %v181 = vrsqrt.pop %v102
  %v182 = vmul.f32 %v181, %v102
  %v183 = vmul.f32 %v182, %v181
  %v184 = vmul.f32 0.5, %v183
  %v185 = vsub.f32 1.5, %v184
  %v186 = vmul.f32 %v181, %v185
  %vm187 = vweird.f32 %v102
  %vm188 = vweird.f32 %v181
  %vm189 = vmor %vm187, %vm188
  %v190 = vsel %vm189, %v181, %v186
  %v191 = vrsqrt.pop %v103
  %v192 = vmul.f32 %v191, %v103
  %v193 = vmul.f32 %v192, %v191
  %v194 = vmul.f32 0.5, %v193
  %v195 = vsub.f32 1.5, %v194
  %v196 = vmul.f32 %v191, %v195
  %vm197 = vweird.f32 %v103
  %vm198 = vweird.f32 %v191
  %vm199 = vmor %vm197, %vm198
  %v200 = vsel %vm199, %v191, %v196
  %v201 = vrsqrt.pop %v104
  %v202 = vmul.f32 %v201, %v104
  %v203 = vmul.f32 %v202, %v201
  %v204 = vmul.f32 0.5, %v203
  %v205 = vsub.f32 1.5, %v204
  %v206 = vmul.f32 %v201, %v205
  %vm207 = vweird.f32 %v104
  %vm208 = vweird.f32 %v201
  %vm209 = vmor %vm207, %vm208
  %v210 = vsel %vm209, %v201, %v206
  %v211 = vrsqrt.pop %v105
  %v212 = vmul.f32 %v211, %v105
  %v213 = vmul.f32 %v212, %v211
  %v214 = vmul.f32 0.5, %v213
  %v215 = vsub.f32 1.5, %v214
  %v216 = vmul.f32 %v211, %v215
  %vm217 = vweird.f32 %v105
  %vm218 = vweird.f32 %v211
  %vm219 = vmor %vm217, %vm218
  %v220 = vsel %vm219, %v211, %v216
  %v221 = vrsqrt.pop %v106
  %v222 = vmul.f32 %v221, %v106
  %v223 = vmul.f32 %v222, %v221
  %v224 = vmul.f32 0.5, %v223
  %v225 = vsub.f32 1.5, %v224
  %v226 = vmul.f32 %v221, %v225
  %vm227 = vweird.f32 %v106
  %vm228 = vweird.f32 %v221
  %vm229 = vmor %vm227, %vm228
  %v230 = vsel %vm229, %v221, %v226
  %v231 = vrsqrt.pop %v107
  %v232 = vmul.f32 %v231, %v107
  %v233 = vmul.f32 %v232, %v231
  %v234 = vmul.f32 0.5, %v233
  %v235 = vsub.f32 1.5, %v234
  %v236 = vmul.f32 %v231, %v235
  %vm237 = vweird.f32 %v107
  %vm238 = vweird.f32 %v231
  %vm239 = vmor %vm237, %vm238
  %v240 = vsel %vm239, %v231, %v236
  %v241 = vrsqrt.pop %v108
  %v242 = vmul.f32 %v241, %v108
  %v243 = vmul.f32 %v242, %v241
  %v244 = vmul.f32 0.5, %v243
  %v245 = vsub.f32 1.5, %v244
  %v246 = vmul.f32 %v241, %v245
  %vm247 = vweird.f32 %v108
  %vm248 = vweird.f32 %v241
  %vm249 = vmor %vm247, %vm248
  %v250 = vsel %vm249, %v241, %v246
  %v251 = vrsqrt.pop %v109
  %v252 = vmul.f32 %v251, %v109
  %v253 = vmul.f32 %v252, %v251
  %v254 = vmul.f32 0.5, %v253
  %v255 = vsub.f32 1.5, %v254
  %v256 = vmul.f32 %v251, %v255
  %vm257 = vweird.f32 %v109
  %vm258 = vweird.f32 %v251
  %vm259 = vmor %vm257, %vm258
  %v260 = vsel %vm259, %v251, %v256
  %v261 = vrsqrt.pop %v110
  %v262 = vmul.f32 %v261, %v110
  %v263 = vmul.f32 %v262, %v261
  %v264 = vmul.f32 0.5, %v263
  %v265 = vsub.f32 1.5, %v264
  %v266 = vmul.f32 %v261, %v265
  %vm267 = vweird.f32 %v110
  %vm268 = vweird.f32 %v261
  %vm269 = vmor %vm267, %vm268
  %v270 = vsel %vm269, %v261, %v266
  %v271 = vmul.f32 %v14, %v120
  %v272 = vmul.f32 %v15, %v130
  %v273 = vmul.f32 %v16, %v140
  %v274 = vmul.f32 %v17, %v150
  %v275 = vmul.f32 %v18, %v160
  %v276 = vmul.f32 %v19, %v170
  %v277 = vmul.f32 %v20, %v180
  %v278 = vmul.f32 %v21, %v190
  %v279 = vmul.f32 %v22, %v200
  %v280 = vmul.f32 %v23, %v210
  %v281 = vmul.f32 %v24, %v220
  %v282 = vmul.f32 %v25, %v230
  %v283 = vmul.f32 %v26, %v240
  %v284 = vmul.f32 %v27, %v250
  %v285 = vmul.f32 %v28, %v260
  %v286 = vmul.f32 %v29, %v270
  %v287 = vld [vmem:[%s1 + $0x48] sm:$0xff]
  %v288 = vld [vmem:[%s1 + $0x50] sm:$0xff]
  %v289 = vld [vmem:[%s1 + $0x58] sm:$0xff]
  %v290 = vld [vmem:[%s1 + $0x60] sm:$0xff]
  %v292 = vsel %vm46, %v14, 0
  %v295 = vsel %vm46, %v15, 0
  %v298 = vsel %vm46, %v16, 0
  %v301 = vsel %vm46, %v17, 0
  %v304 = vsel %vm46, %v18, 0
  %v307 = vsel %vm46, %v19, 0
  %v310 = vsel %vm46, %v20, 0
  %v313 = vsel %vm46, %v21, 0
  %v316 = vsel %vm46, %v22, 0
  %v319 = vsel %vm46, %v23, 0
  %v322 = vsel %vm46, %v24, 0
  %v325 = vsel %vm46, %v25, 0
  %v328 = vsel %vm46, %v26, 0
  %v331 = vsel %vm46, %v27, 0
  %v334 = vsel %vm46, %v28, 0
  %v337 = vsel %vm46, %v29, 0
  %339 = vmatpush.msra.mxu0 0.0
  %340 = vmatpush.msra.mxu0 0.0
  %341 = vmatpush.msra.mxu0 0.0
  %342 = vmatpush.msra.mxu0 0.0
  %343 = vmatpush.msra.mxu0 0.0
  %344 = vmatpush.msra.mxu0 0.0
  %345 = vmatpush.msra.mxu0 0.0
  %346 = vmatpush.msra.mxu0 0.0
  %347 = vmatpush.msra.mxu0 0.0
  %348 = vmatpush.msra.mxu0 0.0
  %349 = vmatpush.msra.mxu0 0.0
  %350 = vmatpush.msra.mxu0 0.0
  %351 = vmatpush.msra.mxu0 %v290
  %352 = vmatpush.msra.mxu0 %v289
  %353 = vmatpush.msra.mxu0 %v288
  %354 = vmatpush.msra.mxu0 %v287
  %355 = vmatmul.f32.gmra.mxu0 %v292
  %v356 = vpop.f32.mrf.mxu0
  %v357 = vadd.f32 0.0, %v356
  %358 = vmatmul.f32.gmra.mxu0 %v295
  %v359 = vpop.f32.mrf.mxu0
  %v360 = vadd.f32 0.0, %v359
  %361 = vmatmul.f32.gmra.mxu0 %v298
  %v362 = vpop.f32.mrf.mxu0
  %v363 = vadd.f32 0.0, %v362
  %364 = vmatmul.f32.gmra.mxu0 %v301
  %v365 = vpop.f32.mrf.mxu0
  %v366 = vadd.f32 0.0, %v365
  %367 = vmatmul.f32.gmra.mxu0 %v304
  %v368 = vpop.f32.mrf.mxu0
  %v369 = vadd.f32 0.0, %v368
  %370 = vmatmul.f32.gmra.mxu0 %v307
  %v371 = vpop.f32.mrf.mxu0
  %v372 = vadd.f32 0.0, %v371
  %373 = vmatmul.f32.gmra.mxu0 %v310
  %v374 = vpop.f32.mrf.mxu0
  %v375 = vadd.f32 0.0, %v374
  %376 = vmatmul.f32.gmra.mxu0 %v313
  %v377 = vpop.f32.mrf.mxu0
  %v378 = vadd.f32 0.0, %v377
  %379 = vmatmul.f32.gmra.mxu0 %v316
  %v380 = vpop.f32.mrf.mxu0
  %v381 = vadd.f32 0.0, %v380
  %382 = vmatmul.f32.gmra.mxu0 %v319
  %v383 = vpop.f32.mrf.mxu0
  %v384 = vadd.f32 0.0, %v383
  %385 = vmatmul.f32.gmra.mxu0 %v322
  %v386 = vpop.f32.mrf.mxu0
  %v387 = vadd.f32 0.0, %v386
  %388 = vmatmul.f32.gmra.mxu0 %v325
  %v389 = vpop.f32.mrf.mxu0
  %v390 = vadd.f32 0.0, %v389
  %391 = vmatmul.f32.gmra.mxu0 %v328
  %v392 = vpop.f32.mrf.mxu0
  %v393 = vadd.f32 0.0, %v392
  %394 = vmatmul.f32.gmra.mxu0 %v331
  %v395 = vpop.f32.mrf.mxu0
  %v396 = vadd.f32 0.0, %v395
  %397 = vmatmul.f32.gmra.mxu0 %v334
  %v398 = vpop.f32.mrf.mxu0
  %v399 = vadd.f32 0.0, %v398
  %400 = vmatmul.f32.gmra.mxu0 %v337
  %v401 = vpop.f32.mrf.mxu0
  %v402 = vadd.f32 0.0, %v401
  %403 = vdwg.mxu0
  %v404 = vld [vmem:[%s1 + $0x168] sm:$0xff]
  %v405 = vld [vmem:[%s1 + $0x170] sm:$0xff]
  %v406 = vld [vmem:[%s1 + $0x178] sm:$0xff]
  %v407 = vld [vmem:[%s1 + $0x180] sm:$0xff]
  %v408 = vld [vmem:[%s1 + $0x188] sm:$0xff]
  %v409 = vld [vmem:[%s1 + $0x190] sm:$0xff]
  %v410 = vld [vmem:[%s1 + $0x198] sm:$0xff]
  %v411 = vld [vmem:[%s1 + $0x1a0] sm:$0xff]
  %v412 = vld [vmem:[%s1 + $0x1a8] sm:$0xff]
  %v413 = vld [vmem:[%s1 + $0x1b0] sm:$0xff]
  %v414 = vld [vmem:[%s1 + $0x1b8] sm:$0xff]
  %v415 = vld [vmem:[%s1 + $0x1c0] sm:$0xff]
  %v416 = vld [vmem:[%s1 + $0x1c8] sm:$0xff]
  %v417 = vld [vmem:[%s1 + $0x1d0] sm:$0xff]
  %v418 = vld [vmem:[%s1 + $0x1d8] sm:$0xff]
  %v419 = vld [vmem:[%s1 + $0x1e0] sm:$0xff]
  %v421 = vsel %vm46, %v357, 0
  %v424 = vsel %vm46, %v360, 0
  %v427 = vsel %vm46, %v363, 0
  %v430 = vsel %vm46, %v366, 0
  %v433 = vsel %vm46, %v369, 0
  %v436 = vsel %vm46, %v372, 0
  %v439 = vsel %vm46, %v375, 0
  %v442 = vsel %vm46, %v378, 0
  %v445 = vsel %vm46, %v381, 0
  %v448 = vsel %vm46, %v384, 0
  %v451 = vsel %vm46, %v387, 0
  %v454 = vsel %vm46, %v390, 0
  %v457 = vsel %vm46, %v393, 0
  %v460 = vsel %vm46, %v396, 0
  %v463 = vsel %vm46, %v399, 0
  %v466 = vsel %vm46, %v402, 0
  %468 = vmatpush.xpose.msra.mxu0 %v337
  %469 = vmatpush.xpose.msra.mxu0 %v334
  %470 = vmatpush.xpose.msra.mxu0 %v331
  %471 = vmatpush.xpose.msra.mxu0 %v328
  %472 = vmatpush.xpose.msra.mxu0 %v325
  %473 = vmatpush.xpose.msra.mxu0 %v322
  %474 = vmatpush.xpose.msra.mxu0 %v319
  %475 = vmatpush.xpose.msra.mxu0 %v316
  %476 = vmatpush.xpose.msra.mxu0 %v313
  %477 = vmatpush.xpose.msra.mxu0 %v310
  %478 = vmatpush.xpose.msra.mxu0 %v307
  %479 = vmatpush.xpose.msra.mxu0 %v304
  %480 = vmatpush.xpose.msra.mxu0 %v301
  %481 = vmatpush.xpose.msra.mxu0 %v298
  %482 = vmatpush.xpose.msra.mxu0 %v295
  %483 = vmatpush.xpose.msra.mxu0 %v292
  %484 = vmatmul.f32.gmra.mxu0 %v421
  %v485 = vpop.f32.mrf.mxu0
  %v486 = vadd.f32 %v404, %v485
  %487 = vmatmul.f32.gmra.mxu0 %v424
  %v488 = vpop.f32.mrf.mxu0
  %v489 = vadd.f32 %v405, %v488
  %490 = vmatmul.f32.gmra.mxu0 %v427
  %v491 = vpop.f32.mrf.mxu0
  %v492 = vadd.f32 %v406, %v491
  %493 = vmatmul.f32.gmra.mxu0 %v430
  %v494 = vpop.f32.mrf.mxu0
  %v495 = vadd.f32 %v407, %v494
  %496 = vmatmul.f32.gmra.mxu0 %v433
  %v497 = vpop.f32.mrf.mxu0
  %v498 = vadd.f32 %v408, %v497
  %499 = vmatmul.f32.gmra.mxu0 %v436
  %v500 = vpop.f32.mrf.mxu0
  %v501 = vadd.f32 %v409, %v500
  %502 = vmatmul.f32.gmra.mxu0 %v439
  %v503 = vpop.f32.mrf.mxu0
  %v504 = vadd.f32 %v410, %v503
  %505 = vmatmul.f32.gmra.mxu0 %v442
  %v506 = vpop.f32.mrf.mxu0
  %v507 = vadd.f32 %v411, %v506
  %508 = vmatmul.f32.gmra.mxu0 %v445
  %v509 = vpop.f32.mrf.mxu0
  %v510 = vadd.f32 %v412, %v509
  %511 = vmatmul.f32.gmra.mxu0 %v448
  %v512 = vpop.f32.mrf.mxu0
  %v513 = vadd.f32 %v413, %v512
  %514 = vmatmul.f32.gmra.mxu0 %v451
  %v515 = vpop.f32.mrf.mxu0
  %v516 = vadd.f32 %v414, %v515
  %517 = vmatmul.f32.gmra.mxu0 %v454
  %v518 = vpop.f32.mrf.mxu0
  %v519 = vadd.f32 %v415, %v518
  %520 = vmatmul.f32.gmra.mxu0 %v457
  %v521 = vpop.f32.mrf.mxu0
  %v522 = vadd.f32 %v416, %v521
  %523 = vmatmul.f32.gmra.mxu0 %v460
  %v524 = vpop.f32.mrf.mxu0
  %v525 = vadd.f32 %v417, %v524
  %526 = vmatmul.f32.gmra.mxu0 %v463
  %v527 = vpop.f32.mrf.mxu0
  %v528 = vadd.f32 %v418, %v527
  %529 = vmatmul.f32.gmra.mxu0 %v466
  %v530 = vpop.f32.mrf.mxu0
  %v531 = vadd.f32 %v419, %v530
  %532 = vdwg.mxu0
  %533 = vmax.xlane.f32.xlu0 %v486
  %v534 = vpop.xlane.xlu0 %533
  %535 = vmax.xlane.f32.xlu0 %v489
  %v536 = vpop.xlane.xlu0 %535
  %537 = vmax.xlane.f32.xlu0 %v492
  %v538 = vpop.xlane.xlu0 %537
  %539 = vmax.xlane.f32.xlu0 %v495
  %v540 = vpop.xlane.xlu0 %539
  %541 = vmax.xlane.f32.xlu0 %v498
  %v542 = vpop.xlane.xlu0 %541
  %543 = vmax.xlane.f32.xlu0 %v501
  %v544 = vpop.xlane.xlu0 %543
  %545 = vmax.xlane.f32.xlu0 %v504
  %v546 = vpop.xlane.xlu0 %545
  %547 = vmax.xlane.f32.xlu0 %v507
  %v548 = vpop.xlane.xlu0 %547
  %549 = vmax.xlane.f32.xlu0 %v510
  %v550 = vpop.xlane.xlu0 %549
  %551 = vmax.xlane.f32.xlu0 %v513
  %v552 = vpop.xlane.xlu0 %551
  %553 = vmax.xlane.f32.xlu0 %v516
  %v554 = vpop.xlane.xlu0 %553
  %555 = vmax.xlane.f32.xlu0 %v519
  %v556 = vpop.xlane.xlu0 %555
  %557 = vmax.xlane.f32.xlu0 %v522
  %v558 = vpop.xlane.xlu0 %557
  %559 = vmax.xlane.f32.xlu0 %v525
  %v560 = vpop.xlane.xlu0 %559
  %561 = vmax.xlane.f32.xlu0 %v528
  %v562 = vpop.xlane.xlu0 %561
  %563 = vmax.xlane.f32.xlu0 %v531
  %v564 = vpop.xlane.xlu0 %563
  %v565 = vsub.f32 %v486, %v534
  %v566 = vsub.f32 %v489, %v536
  %v567 = vsub.f32 %v492, %v538
  %v568 = vsub.f32 %v495, %v540
  %v569 = vsub.f32 %v498, %v542
  %v570 = vsub.f32 %v501, %v544
  %v571 = vsub.f32 %v504, %v546
  %v572 = vsub.f32 %v507, %v548
  %v573 = vsub.f32 %v510, %v550
  %v574 = vsub.f32 %v513, %v552
  %v575 = vsub.f32 %v516, %v554
  %v576 = vsub.f32 %v519, %v556
  %v577 = vsub.f32 %v522, %v558
  %v578 = vsub.f32 %v525, %v560
  %v579 = vsub.f32 %v528, %v562
  %v580 = vsub.f32 %v531, %v564
  %v581 = vmul.f32 %v565, 1.442695
  %v582 = vpow.pop %v581
  %v583 = vmul.f32 %v566, 1.442695
  %v584 = vpow.pop %v583
  %v585 = vmul.f32 %v567, 1.442695
  %v586 = vpow.pop %v585
  %v587 = vmul.f32 %v568, 1.442695
  %v588 = vpow.pop %v587
  %v589 = vmul.f32 %v569, 1.442695
  %v590 = vpow.pop %v589
  %v591 = vmul.f32 %v570, 1.442695
  %v592 = vpow.pop %v591
  %v593 = vmul.f32 %v571, 1.442695
  %v594 = vpow.pop %v593
  %v595 = vmul.f32 %v572, 1.442695
  %v596 = vpow.pop %v595
  %v597 = vmul.f32 %v573, 1.442695
  %v598 = vpow.pop %v597
  %v599 = vmul.f32 %v574, 1.442695
  %v600 = vpow.pop %v599
  %v601 = vmul.f32 %v575, 1.442695
  %v602 = vpow.pop %v601
  %v603 = vmul.f32 %v576, 1.442695
  %v604 = vpow.pop %v603
  %v605 = vmul.f32 %v577, 1.442695
  %v606 = vpow.pop %v605
  %v607 = vmul.f32 %v578, 1.442695
  %v608 = vpow.pop %v607
  %v609 = vmul.f32 %v579, 1.442695
  %v610 = vpow.pop %v609
  %v611 = vmul.f32 %v580, 1.442695
  %v612 = vpow.pop %v611
  %613 = vadd.xlane.f32.xlu0 %v582
  %v614 = vpop.xlane.xlu0 %613
  %615 = vadd.xlane.f32.xlu0 %v584
  %v616 = vpop.xlane.xlu0 %615
  %617 = vadd.xlane.f32.xlu0 %v586
  %v618 = vpop.xlane.xlu0 %617
  %619 = vadd.xlane.f32.xlu0 %v588
  %v620 = vpop.xlane.xlu0 %619
  %621 = vadd.xlane.f32.xlu0 %v590
  %v622 = vpop.xlane.xlu0 %621
  %623 = vadd.xlane.f32.xlu0 %v592
  %v624 = vpop.xlane.xlu0 %623
  %625 = vadd.xlane.f32.xlu0 %v594
  %v626 = vpop.xlane.xlu0 %625
  %627 = vadd.xlane.f32.xlu0 %v596
  %v628 = vpop.xlane.xlu0 %627
  %629 = vadd.xlane.f32.xlu0 %v598
  %v630 = vpop.xlane.xlu0 %629
  %631 = vadd.xlane.f32.xlu0 %v600
  %v632 = vpop.xlane.xlu0 %631
  %633 = vadd.xlane.f32.xlu0 %v602
  %v634 = vpop.xlane.xlu0 %633
  %635 = vadd.xlane.f32.xlu0 %v604
  %v636 = vpop.xlane.xlu0 %635
  %637 = vadd.xlane.f32.xlu0 %v606
  %v638 = vpop.xlane.xlu0 %637
  %639 = vadd.xlane.f32.xlu0 %v608
  %v640 = vpop.xlane.xlu0 %639
  %641 = vadd.xlane.f32.xlu0 %v610
  %v642 = vpop.xlane.xlu0 %641
  %643 = vadd.xlane.f32.xlu0 %v612
  %v644 = vpop.xlane.xlu0 %643
  %v645 = vrcp.pop %v614
  %v646 = vrcp.pop %v616
  %v647 = vrcp.pop %v618
  %v648 = vrcp.pop %v620
  %v649 = vrcp.pop %v622
  %v650 = vrcp.pop %v624
  %v651 = vrcp.pop %v626
  %v652 = vrcp.pop %v628
  %v653 = vrcp.pop %v630
  %v654 = vrcp.pop %v632
  %v655 = vrcp.pop %v634
  %v656 = vrcp.pop %v636
  %v657 = vrcp.pop %v638
  %v658 = vrcp.pop %v640
  %v659 = vrcp.pop %v642
  %v660 = vrcp.pop %v644
  %v661 = vmul.f32 %v582, %v645
  %v662 = vmul.f32 %v584, %v646
  %v663 = vmul.f32 %v586, %v647
  %v664 = vmul.f32 %v588, %v648
  %v665 = vmul.f32 %v590, %v649
  %v666 = vmul.f32 %v592, %v650
  %v667 = vmul.f32 %v594, %v651
  %v668 = vmul.f32 %v596, %v652
  %v669 = vmul.f32 %v598, %v653
  %v670 = vmul.f32 %v600, %v654
  %v671 = vmul.f32 %v602, %v655
  %v672 = vmul.f32 %v604, %v656
  %v673 = vmul.f32 %v606, %v657
  %v674 = vmul.f32 %v608, %v658
  %v675 = vmul.f32 %v610, %v659
  %v676 = vmul.f32 %v612, %v660
  %677 = vmatpush.msra.mxu0 %v29
  %678 = vmatpush.msra.mxu0 %v28
  %679 = vmatpush.msra.mxu0 %v27
  %680 = vmatpush.msra.mxu0 %v26
  %681 = vmatpush.msra.mxu0 %v25
  %682 = vmatpush.msra.mxu0 %v24
  %683 = vmatpush.msra.mxu0 %v23
  %684 = vmatpush.msra.mxu0 %v22
  %685 = vmatpush.msra.mxu0 %v21
  %686 = vmatpush.msra.mxu0 %v20
  %687 = vmatpush.msra.mxu0 %v19
  %688 = vmatpush.msra.mxu0 %v18
  %689 = vmatpush.msra.mxu0 %v17
  %690 = vmatpush.msra.mxu0 %v16
  %691 = vmatpush.msra.mxu0 %v15
  %692 = vmatpush.msra.mxu0 %v14
  %693 = vmatmul.f32.gmra.mxu0 %v661
  %v694 = vpop.f32.mrf.mxu0
  %v695 = vadd.f32 0.0, %v694
  %696 = vmatmul.f32.gmra.mxu0 %v662
  %v697 = vpop.f32.mrf.mxu0
  %v698 = vadd.f32 0.0, %v697
  %699 = vmatmul.f32.gmra.mxu0 %v663
  %v700 = vpop.f32.mrf.mxu0
  %v701 = vadd.f32 0.0, %v700
  %702 = vmatmul.f32.gmra.mxu0 %v664
  %v703 = vpop.f32.mrf.mxu0
  %v704 = vadd.f32 0.0, %v703
  %705 = vmatmul.f32.gmra.mxu0 %v665
  %v706 = vpop.f32.mrf.mxu0
  %v707 = vadd.f32 0.0, %v706
  %708 = vmatmul.f32.gmra.mxu0 %v666
  %v709 = vpop.f32.mrf.mxu0
  %v710 = vadd.f32 0.0, %v709
  %711 = vmatmul.f32.gmra.mxu0 %v667
  %v712 = vpop.f32.mrf.mxu0
  %v713 = vadd.f32 0.0, %v712
  %714 = vmatmul.f32.gmra.mxu0 %v668
  %v715 = vpop.f32.mrf.mxu0
  %v716 = vadd.f32 0.0, %v715
  %717 = vmatmul.f32.gmra.mxu0 %v669
  %v718 = vpop.f32.mrf.mxu0
  %v719 = vadd.f32 0.0, %v718
  %720 = vmatmul.f32.gmra.mxu0 %v670
  %v721 = vpop.f32.mrf.mxu0
  %v722 = vadd.f32 0.0, %v721
  %723 = vmatmul.f32.gmra.mxu0 %v671
  %v724 = vpop.f32.mrf.mxu0
  %v725 = vadd.f32 0.0, %v724
  %726 = vmatmul.f32.gmra.mxu0 %v672
  %v727 = vpop.f32.mrf.mxu0
  %v728 = vadd.f32 0.0, %v727
  %729 = vmatmul.f32.gmra.mxu0 %v673
  %v730 = vpop.f32.mrf.mxu0
  %v731 = vadd.f32 0.0, %v730
  %732 = vmatmul.f32.gmra.mxu0 %v674
  %v733 = vpop.f32.mrf.mxu0
  %v734 = vadd.f32 0.0, %v733
  %735 = vmatmul.f32.gmra.mxu0 %v675
  %v736 = vpop.f32.mrf.mxu0
  %v737 = vadd.f32 0.0, %v736
  %738 = vmatmul.f32.gmra.mxu0 %v676
  %v739 = vpop.f32.mrf.mxu0
  %v740 = vadd.f32 0.0, %v739
  %741 = vdwg.mxu0
  %v742 = vld [vmem:[%s1 + $0x88] sm:$0xff]
  %v743 = vld [vmem:[%s1 + $0x90] sm:$0xff]
  %v744 = vld [vmem:[%s1 + $0x98] sm:$0xff]
  %v745 = vld [vmem:[%s1 + $0xa0] sm:$0xff]
  %v746 = vld [vmem:[%s1 + $0x68] sm:$0xff]
  %v747 = vld [vmem:[%s1 + $0x70] sm:$0xff]
  %v748 = vld [vmem:[%s1 + $0x78] sm:$0xff]
  %v749 = vld [vmem:[%s1 + $0x80] sm:$0xff]
  %750 = vmatpush.msra.mxu0 0.0
  %751 = vmatpush.msra.mxu0 0.0
  %752 = vmatpush.msra.mxu0 0.0
  %753 = vmatpush.msra.mxu0 0.0
  %754 = vmatpush.msra.mxu0 0.0
  %755 = vmatpush.msra.mxu0 0.0
  %756 = vmatpush.msra.mxu0 0.0
  %757 = vmatpush.msra.mxu0 0.0
  %758 = vmatpush.msra.mxu0 0.0
  %759 = vmatpush.msra.mxu0 0.0
  %760 = vmatpush.msra.mxu0 0.0
  %761 = vmatpush.msra.mxu0 0.0
  %762 = vmatpush.msra.mxu0 %v749
  %763 = vmatpush.msra.mxu0 %v748
  %764 = vmatpush.msra.mxu0 %v747
  %765 = vmatpush.msra.mxu0 %v746
  %766 = vmatmul.f32.gmra.mxu0 %v292
  %v767 = vpop.f32.mrf.mxu0
  %v768 = vadd.f32 0.0, %v767
  %769 = vmatmul.f32.gmra.mxu0 %v295
  %v770 = vpop.f32.mrf.mxu0
  %v771 = vadd.f32 0.0, %v770
  %772 = vmatmul.f32.gmra.mxu0 %v298
  %v773 = vpop.f32.mrf.mxu0
  %v774 = vadd.f32 0.0, %v773
  %775 = vmatmul.f32.gmra.mxu0 %v301
  %v776 = vpop.f32.mrf.mxu0
  %v777 = vadd.f32 0.0, %v776
  %778 = vmatmul.f32.gmra.mxu0 %v304
  %v779 = vpop.f32.mrf.mxu0
  %v780 = vadd.f32 0.0, %v779
  %781 = vmatmul.f32.gmra.mxu0 %v307
  %v782 = vpop.f32.mrf.mxu0
  %v783 = vadd.f32 0.0, %v782
  %784 = vmatmul.f32.gmra.mxu0 %v310
  %v785 = vpop.f32.mrf.mxu0
  %v786 = vadd.f32 0.0, %v785
  %787 = vmatmul.f32.gmra.mxu0 %v313
  %v788 = vpop.f32.mrf.mxu0
  %v789 = vadd.f32 0.0, %v788
  %790 = vmatmul.f32.gmra.mxu0 %v316
  %v791 = vpop.f32.mrf.mxu0
  %v792 = vadd.f32 0.0, %v791
  %793 = vmatmul.f32.gmra.mxu0 %v319
  %v794 = vpop.f32.mrf.mxu0
  %v795 = vadd.f32 0.0, %v794
  %796 = vmatmul.f32.gmra.mxu0 %v322
  %v797 = vpop.f32.mrf.mxu0
  %v798 = vadd.f32 0.0, %v797
  %799 = vmatmul.f32.gmra.mxu0 %v325
  %v800 = vpop.f32.mrf.mxu0
  %v801 = vadd.f32 0.0, %v800
  %802 = vmatmul.f32.gmra.mxu0 %v328
  %v803 = vpop.f32.mrf.mxu0
  %v804 = vadd.f32 0.0, %v803
  %805 = vmatmul.f32.gmra.mxu0 %v331
  %v806 = vpop.f32.mrf.mxu0
  %v807 = vadd.f32 0.0, %v806
  %808 = vmatmul.f32.gmra.mxu0 %v334
  %v809 = vpop.f32.mrf.mxu0
  %v810 = vadd.f32 0.0, %v809
  %811 = vmatmul.f32.gmra.mxu0 %v337
  %v812 = vpop.f32.mrf.mxu0
  %v813 = vadd.f32 0.0, %v812
  %814 = vdwg.mxu0
  %v816 = vsel %vm46, %v768, 0
  %v819 = vsel %vm46, %v771, 0
  %v822 = vsel %vm46, %v774, 0
  %v825 = vsel %vm46, %v777, 0
  %v828 = vsel %vm46, %v780, 0
  %v831 = vsel %vm46, %v783, 0
  %v834 = vsel %vm46, %v786, 0
  %v837 = vsel %vm46, %v789, 0
  %v840 = vsel %vm46, %v792, 0
  %v843 = vsel %vm46, %v795, 0
  %v846 = vsel %vm46, %v798, 0
  %v849 = vsel %vm46, %v801, 0
  %v852 = vsel %vm46, %v804, 0
  %v855 = vsel %vm46, %v807, 0
  %v858 = vsel %vm46, %v810, 0
  %v861 = vsel %vm46, %v813, 0
  %863 = vmatpush.xpose.msra.mxu0 %v337
  %864 = vmatpush.xpose.msra.mxu0 %v334
  %865 = vmatpush.xpose.msra.mxu0 %v331
  %866 = vmatpush.xpose.msra.mxu0 %v328
  %867 = vmatpush.xpose.msra.mxu0 %v325
  %868 = vmatpush.xpose.msra.mxu0 %v322
  %869 = vmatpush.xpose.msra.mxu0 %v319
  %870 = vmatpush.xpose.msra.mxu0 %v316
  %871 = vmatpush.xpose.msra.mxu0 %v313
  %872 = vmatpush.xpose.msra.mxu0 %v310
  %873 = vmatpush.xpose.msra.mxu0 %v307
  %874 = vmatpush.xpose.msra.mxu0 %v304
  %875 = vmatpush.xpose.msra.mxu0 %v301
  %876 = vmatpush.xpose.msra.mxu0 %v298
  %877 = vmatpush.xpose.msra.mxu0 %v295
  %878 = vmatpush.xpose.msra.mxu0 %v292
  %879 = vmatmul.f32.gmra.mxu0 %v816
  %v880 = vpop.f32.mrf.mxu0
  %v881 = vadd.f32 %v404, %v880
  %882 = vmatmul.f32.gmra.mxu0 %v819
  %v883 = vpop.f32.mrf.mxu0
  %v884 = vadd.f32 %v405, %v883
  %885 = vmatmul.f32.gmra.mxu0 %v822
  %v886 = vpop.f32.mrf.mxu0
  %v887 = vadd.f32 %v406, %v886
  %888 = vmatmul.f32.gmra.mxu0 %v825
  %v889 = vpop.f32.mrf.mxu0
  %v890 = vadd.f32 %v407, %v889
  %891 = vmatmul.f32.gmra.mxu0 %v828
  %v892 = vpop.f32.mrf.mxu0
  %v893 = vadd.f32 %v408, %v892
  %894 = vmatmul.f32.gmra.mxu0 %v831
  %v895 = vpop.f32.mrf.mxu0
  %v896 = vadd.f32 %v409, %v895
  %897 = vmatmul.f32.gmra.mxu0 %v834
  %v898 = vpop.f32.mrf.mxu0
  %v899 = vadd.f32 %v410, %v898
  %900 = vmatmul.f32.gmra.mxu0 %v837
  %v901 = vpop.f32.mrf.mxu0
  %v902 = vadd.f32 %v411, %v901
  %903 = vmatmul.f32.gmra.mxu0 %v840
  %v904 = vpop.f32.mrf.mxu0
  %v905 = vadd.f32 %v412, %v904
  %906 = vmatmul.f32.gmra.mxu0 %v843
  %v907 = vpop.f32.mrf.mxu0
  %v908 = vadd.f32 %v413, %v907
  %909 = vmatmul.f32.gmra.mxu0 %v846
  %v910 = vpop.f32.mrf.mxu0
  %v911 = vadd.f32 %v414, %v910
  %912 = vmatmul.f32.gmra.mxu0 %v849
  %v913 = vpop.f32.mrf.mxu0
  %v914 = vadd.f32 %v415, %v913
  %915 = vmatmul.f32.gmra.mxu0 %v852
  %v916 = vpop.f32.mrf.mxu0
  %v917 = vadd.f32 %v416, %v916
  %918 = vmatmul.f32.gmra.mxu0 %v855
  %v919 = vpop.f32.mrf.mxu0
  %v920 = vadd.f32 %v417, %v919
  %921 = vmatmul.f32.gmra.mxu0 %v858
  %v922 = vpop.f32.mrf.mxu0
  %v923 = vadd.f32 %v418, %v922
  %924 = vmatmul.f32.gmra.mxu0 %v861
  %v925 = vpop.f32.mrf.mxu0
  %v926 = vadd.f32 %v419, %v925
  %927 = vdwg.mxu0
  %928 = vmax.xlane.f32.xlu0 %v881
  %v929 = vpop.xlane.xlu0 %928
  %930 = vmax.xlane.f32.xlu0 %v884
  %v931 = vpop.xlane.xlu0 %930
  %932 = vmax.xlane.f32.xlu0 %v887
  %v933 = vpop.xlane.xlu0 %932
  %934 = vmax.xlane.f32.xlu0 %v890
  %v935 = vpop.xlane.xlu0 %934
  %936 = vmax.xlane.f32.xlu0 %v893
  %v937 = vpop.xlane.xlu0 %936
  %938 = vmax.xlane.f32.xlu0 %v896
  %v939 = vpop.xlane.xlu0 %938
  %940 = vmax.xlane.f32.xlu0 %v899
  %v941 = vpop.xlane.xlu0 %940
  %942 = vmax.xlane.f32.xlu0 %v902
  %v943 = vpop.xlane.xlu0 %942
  %944 = vmax.xlane.f32.xlu0 %v905
  %v945 = vpop.xlane.xlu0 %944
  %946 = vmax.xlane.f32.xlu0 %v908
  %v947 = vpop.xlane.xlu0 %946
  %948 = vmax.xlane.f32.xlu0 %v911
  %v949 = vpop.xlane.xlu0 %948
  %950 = vmax.xlane.f32.xlu0 %v914
  %v951 = vpop.xlane.xlu0 %950
  %952 = vmax.xlane.f32.xlu0 %v917
  %v953 = vpop.xlane.xlu0 %952
  %954 = vmax.xlane.f32.xlu0 %v920
  %v955 = vpop.xlane.xlu0 %954
  %956 = vmax.xlane.f32.xlu0 %v923
  %v957 = vpop.xlane.xlu0 %956
  %958 = vmax.xlane.f32.xlu0 %v926
  %v959 = vpop.xlane.xlu0 %958
  %v960 = vsub.f32 %v881, %v929
  %v961 = vsub.f32 %v884, %v931
  %v962 = vsub.f32 %v887, %v933
  %v963 = vsub.f32 %v890, %v935
  %v964 = vsub.f32 %v893, %v937
  %v965 = vsub.f32 %v896, %v939
  %v966 = vsub.f32 %v899, %v941
  %v967 = vsub.f32 %v902, %v943
  %v968 = vsub.f32 %v905, %v945
  %v969 = vsub.f32 %v908, %v947
  %v970 = vsub.f32 %v911, %v949
  %v971 = vsub.f32 %v914, %v951
  %v972 = vsub.f32 %v917, %v953
  %v973 = vsub.f32 %v920, %v955
  %v974 = vsub.f32 %v923, %v957
  %v975 = vsub.f32 %v926, %v959
  %v976 = vmul.f32 %v960, 1.442695
  %v977 = vpow.pop %v976
  %v978 = vmul.f32 %v961, 1.442695
  %v979 = vpow.pop %v978
  %v980 = vmul.f32 %v962, 1.442695
  %v981 = vpow.pop %v980
  %v982 = vmul.f32 %v963, 1.442695
  %v983 = vpow.pop %v982
  %v984 = vmul.f32 %v964, 1.442695
  %v985 = vpow.pop %v984
  %v986 = vmul.f32 %v965, 1.442695
  %v987 = vpow.pop %v986
  %v988 = vmul.f32 %v966, 1.442695
  %v989 = vpow.pop %v988
  %v990 = vmul.f32 %v967, 1.442695
  %v991 = vpow.pop %v990
  %v992 = vmul.f32 %v968, 1.442695
  %v993 = vpow.pop %v992
  %v994 = vmul.f32 %v969, 1.442695
  %v995 = vpow.pop %v994
  %v996 = vmul.f32 %v970, 1.442695
  %v997 = vpow.pop %v996
  %v998 = vmul.f32 %v971, 1.442695
  %v999 = vpow.pop %v998
  %v1000 = vmul.f32 %v972, 1.442695
  %v1001 = vpow.pop %v1000
  %v1002 = vmul.f32 %v973, 1.442695
  %v1003 = vpow.pop %v1002
  %v1004 = vmul.f32 %v974, 1.442695
  %v1005 = vpow.pop %v1004
  %v1006 = vmul.f32 %v975, 1.442695
  %v1007 = vpow.pop %v1006
  %1008 = vadd.xlane.f32.xlu0 %v977
  %v1009 = vpop.xlane.xlu0 %1008
  %1010 = vadd.xlane.f32.xlu0 %v979
  %v1011 = vpop.xlane.xlu0 %1010
  %1012 = vadd.xlane.f32.xlu0 %v981
  %v1013 = vpop.xlane.xlu0 %1012
  %1014 = vadd.xlane.f32.xlu0 %v983
  %v1015 = vpop.xlane.xlu0 %1014
  %1016 = vadd.xlane.f32.xlu0 %v985
  %v1017 = vpop.xlane.xlu0 %1016
  %1018 = vadd.xlane.f32.xlu0 %v987
  %v1019 = vpop.xlane.xlu0 %1018
  %1020 = vadd.xlane.f32.xlu0 %v989
  %v1021 = vpop.xlane.xlu0 %1020
  %1022 = vadd.xlane.f32.xlu0 %v991
  %v1023 = vpop.xlane.xlu0 %1022
  %1024 = vadd.xlane.f32.xlu0 %v993
  %v1025 = vpop.xlane.xlu0 %1024
  %1026 = vadd.xlane.f32.xlu0 %v995
  %v1027 = vpop.xlane.xlu0 %1026
  %1028 = vadd.xlane.f32.xlu0 %v997
  %v1029 = vpop.xlane.xlu0 %1028
  %1030 = vadd.xlane.f32.xlu0 %v999
  %v1031 = vpop.xlane.xlu0 %1030
  %1032 = vadd.xlane.f32.xlu0 %v1001
  %v1033 = vpop.xlane.xlu0 %1032
  %1034 = vadd.xlane.f32.xlu0 %v1003
  %v1035 = vpop.xlane.xlu0 %1034
  %1036 = vadd.xlane.f32.xlu0 %v1005
  %v1037 = vpop.xlane.xlu0 %1036
  %1038 = vadd.xlane.f32.xlu0 %v1007
  %v1039 = vpop.xlane.xlu0 %1038
  %v1040 = vrcp.pop %v1009
  %v1041 = vrcp.pop %v1011
  %v1042 = vrcp.pop %v1013
  %v1043 = vrcp.pop %v1015
  %v1044 = vrcp.pop %v1017
  %v1045 = vrcp.pop %v1019
  %v1046 = vrcp.pop %v1021
  %v1047 = vrcp.pop %v1023
  %v1048 = vrcp.pop %v1025
  %v1049 = vrcp.pop %v1027
  %v1050 = vrcp.pop %v1029
  %v1051 = vrcp.pop %v1031
  %v1052 = vrcp.pop %v1033
  %v1053 = vrcp.pop %v1035
  %v1054 = vrcp.pop %v1037
  %v1055 = vrcp.pop %v1039
  %v1056 = vmul.f32 %v977, %v1040
  %v1057 = vmul.f32 %v979, %v1041
  %v1058 = vmul.f32 %v981, %v1042
  %v1059 = vmul.f32 %v983, %v1043
  %v1060 = vmul.f32 %v985, %v1044
  %v1061 = vmul.f32 %v987, %v1045
  %v1062 = vmul.f32 %v989, %v1046
  %v1063 = vmul.f32 %v991, %v1047
  %v1064 = vmul.f32 %v993, %v1048
  %v1065 = vmul.f32 %v995, %v1049
  %v1066 = vmul.f32 %v997, %v1050
  %v1067 = vmul.f32 %v999, %v1051
  %v1068 = vmul.f32 %v1001, %v1052
  %v1069 = vmul.f32 %v1003, %v1053
  %v1070 = vmul.f32 %v1005, %v1054
  %v1071 = vmul.f32 %v1007, %v1055
  %1072 = vmatpush.msra.mxu0 %v29
  %1073 = vmatpush.msra.mxu0 %v28
  %1074 = vmatpush.msra.mxu0 %v27
  %1075 = vmatpush.msra.mxu0 %v26
  %1076 = vmatpush.msra.mxu0 %v25
  %1077 = vmatpush.msra.mxu0 %v24
  %1078 = vmatpush.msra.mxu0 %v23
  %1079 = vmatpush.msra.mxu0 %v22
  %1080 = vmatpush.msra.mxu0 %v21
  %1081 = vmatpush.msra.mxu0 %v20
  %1082 = vmatpush.msra.mxu0 %v19
  %1083 = vmatpush.msra.mxu0 %v18
  %1084 = vmatpush.msra.mxu0 %v17
  %1085 = vmatpush.msra.mxu0 %v16
  %1086 = vmatpush.msra.mxu0 %v15
  %1087 = vmatpush.msra.mxu0 %v14
  %1088 = vmatmul.f32.gmra.mxu0 %v1056
  %v1089 = vpop.f32.mrf.mxu0
  %v1090 = vadd.f32 0.0, %v1089
  %1091 = vmatmul.f32.gmra.mxu0 %v1057
  %v1092 = vpop.f32.mrf.mxu0
  %v1093 = vadd.f32 0.0, %v1092
  %1094 = vmatmul.f32.gmra.mxu0 %v1058
  %v1095 = vpop.f32.mrf.mxu0
  %v1096 = vadd.f32 0.0, %v1095
  %1097 = vmatmul.f32.gmra.mxu0 %v1059
  %v1098 = vpop.f32.mrf.mxu0
  %v1099 = vadd.f32 0.0, %v1098
  %1100 = vmatmul.f32.gmra.mxu0 %v1060
  %v1101 = vpop.f32.mrf.mxu0
  %v1102 = vadd.f32 0.0, %v1101
  %1103 = vmatmul.f32.gmra.mxu0 %v1061
  %v1104 = vpop.f32.mrf.mxu0
  %v1105 = vadd.f32 0.0, %v1104
  %1106 = vmatmul.f32.gmra.mxu0 %v1062
  %v1107 = vpop.f32.mrf.mxu0
  %v1108 = vadd.f32 0.0, %v1107
  %1109 = vmatmul.f32.gmra.mxu0 %v1063
  %v1110 = vpop.f32.mrf.mxu0
  %v1111 = vadd.f32 0.0, %v1110
  %1112 = vmatmul.f32.gmra.mxu0 %v1064
  %v1113 = vpop.f32.mrf.mxu0
  %v1114 = vadd.f32 0.0, %v1113
  %1115 = vmatmul.f32.gmra.mxu0 %v1065
  %v1116 = vpop.f32.mrf.mxu0
  %v1117 = vadd.f32 0.0, %v1116
  %1118 = vmatmul.f32.gmra.mxu0 %v1066
  %v1119 = vpop.f32.mrf.mxu0
  %v1120 = vadd.f32 0.0, %v1119
  %1121 = vmatmul.f32.gmra.mxu0 %v1067
  %v1122 = vpop.f32.mrf.mxu0
  %v1123 = vadd.f32 0.0, %v1122
  %1124 = vmatmul.f32.gmra.mxu0 %v1068
  %v1125 = vpop.f32.mrf.mxu0
  %v1126 = vadd.f32 0.0, %v1125
  %1127 = vmatmul.f32.gmra.mxu0 %v1069
  %v1128 = vpop.f32.mrf.mxu0
  %v1129 = vadd.f32 0.0, %v1128
  %1130 = vmatmul.f32.gmra.mxu0 %v1070
  %v1131 = vpop.f32.mrf.mxu0
  %v1132 = vadd.f32 0.0, %v1131
  %1133 = vmatmul.f32.gmra.mxu0 %v1071
  %v1134 = vpop.f32.mrf.mxu0
  %v1135 = vadd.f32 0.0, %v1134
  %1136 = vdwg.mxu0
  %v1137 = vld [vmem:[%s1 + $0xa8] sm:$0xff]
  %v1138 = vld [vmem:[%s1 + $0xb0] sm:$0xff]
  %v1139 = vld [vmem:[%s1 + $0xb8] sm:$0xff]
  %v1140 = vld [vmem:[%s1 + $0xc0] sm:$0xff]
  %v1142 = vsel %vm46, %v1090, 0
  %v1145 = vsel %vm46, %v1093, 0
  %v1148 = vsel %vm46, %v1096, 0
  %v1151 = vsel %vm46, %v1099, 0
  %v1154 = vsel %vm46, %v1102, 0
  %v1157 = vsel %vm46, %v1105, 0
  %v1160 = vsel %vm46, %v1108, 0
  %v1163 = vsel %vm46, %v1111, 0
  %v1166 = vsel %vm46, %v1114, 0
  %v1169 = vsel %vm46, %v1117, 0
  %v1172 = vsel %vm46, %v1120, 0
  %v1175 = vsel %vm46, %v1123, 0
  %v1178 = vsel %vm46, %v1126, 0
  %v1181 = vsel %vm46, %v1129, 0
  %v1184 = vsel %vm46, %v1132, 0
  %v1187 = vsel %vm46, %v1135, 0
  %1189 = vmatpush.msra.mxu0 0.0
  %1190 = vmatpush.msra.mxu0 0.0
  %1191 = vmatpush.msra.mxu0 0.0
  %1192 = vmatpush.msra.mxu0 0.0
  %1193 = vmatpush.msra.mxu0 0.0
  %1194 = vmatpush.msra.mxu0 0.0
  %1195 = vmatpush.msra.mxu0 0.0
  %1196 = vmatpush.msra.mxu0 0.0
  %1197 = vmatpush.msra.mxu0 0.0
  %1198 = vmatpush.msra.mxu0 0.0
  %1199 = vmatpush.msra.mxu0 0.0
  %1200 = vmatpush.msra.mxu0 0.0
  %1201 = vmatpush.msra.mxu0 %v1140
  %1202 = vmatpush.msra.mxu0 %v1139
  %1203 = vmatpush.msra.mxu0 %v1138
  %1204 = vmatpush.msra.mxu0 %v1137
  %1205 = vmatmul.f32.gmra.mxu0 %v1142
  %v1206 = vpop.f32.mrf.mxu0
  %v1207 = vadd.f32 0.0, %v1206
  %1208 = vmatmul.f32.gmra.mxu0 %v1145
  %v1209 = vpop.f32.mrf.mxu0
  %v1210 = vadd.f32 0.0, %v1209
  %1211 = vmatmul.f32.gmra.mxu0 %v1148
  %v1212 = vpop.f32.mrf.mxu0
  %v1213 = vadd.f32 0.0, %v1212
  %1214 = vmatmul.f32.gmra.mxu0 %v1151
  %v1215 = vpop.f32.mrf.mxu0
  %v1216 = vadd.f32 0.0, %v1215
  %1217 = vmatmul.f32.gmra.mxu0 %v1154
  %v1218 = vpop.f32.mrf.mxu0
  %v1219 = vadd.f32 0.0, %v1218
  %1220 = vmatmul.f32.gmra.mxu0 %v1157
  %v1221 = vpop.f32.mrf.mxu0
  %v1222 = vadd.f32 0.0, %v1221
  %1223 = vmatmul.f32.gmra.mxu0 %v1160
  %v1224 = vpop.f32.mrf.mxu0
  %v1225 = vadd.f32 0.0, %v1224
  %1226 = vmatmul.f32.gmra.mxu0 %v1163
  %v1227 = vpop.f32.mrf.mxu0
  %v1228 = vadd.f32 0.0, %v1227
  %1229 = vmatmul.f32.gmra.mxu0 %v1166
  %v1230 = vpop.f32.mrf.mxu0
  %v1231 = vadd.f32 0.0, %v1230
  %1232 = vmatmul.f32.gmra.mxu0 %v1169
  %v1233 = vpop.f32.mrf.mxu0
  %v1234 = vadd.f32 0.0, %v1233
  %1235 = vmatmul.f32.gmra.mxu0 %v1172
  %v1236 = vpop.f32.mrf.mxu0
  %v1237 = vadd.f32 0.0, %v1236
  %1238 = vmatmul.f32.gmra.mxu0 %v1175
  %v1239 = vpop.f32.mrf.mxu0
  %v1240 = vadd.f32 0.0, %v1239
  %1241 = vmatmul.f32.gmra.mxu0 %v1178
  %v1242 = vpop.f32.mrf.mxu0
  %v1243 = vadd.f32 0.0, %v1242
  %1244 = vmatmul.f32.gmra.mxu0 %v1181
  %v1245 = vpop.f32.mrf.mxu0
  %v1246 = vadd.f32 0.0, %v1245
  %1247 = vmatmul.f32.gmra.mxu0 %v1184
  %v1248 = vpop.f32.mrf.mxu0
  %v1249 = vadd.f32 0.0, %v1248
  %1250 = vmatmul.f32.gmra.mxu0 %v1187
  %v1251 = vpop.f32.mrf.mxu0
  %v1252 = vadd.f32 0.0, %v1251
  %1253 = vdwg.mxu0
  %v1255 = vsel %vm46, %v695, 0
  %v1258 = vsel %vm46, %v698, 0
  %v1261 = vsel %vm46, %v701, 0
  %v1264 = vsel %vm46, %v704, 0
  %v1267 = vsel %vm46, %v707, 0
  %v1270 = vsel %vm46, %v710, 0
  %v1273 = vsel %vm46, %v713, 0
  %v1276 = vsel %vm46, %v716, 0
  %v1279 = vsel %vm46, %v719, 0
  %v1282 = vsel %vm46, %v722, 0
  %v1285 = vsel %vm46, %v725, 0
  %v1288 = vsel %vm46, %v728, 0
  %v1291 = vsel %vm46, %v731, 0
  %v1294 = vsel %vm46, %v734, 0
  %v1297 = vsel %vm46, %v737, 0
  %v1300 = vsel %vm46, %v740, 0
  %1302 = vmatpush.msra.mxu0 0.0
  %1303 = vmatpush.msra.mxu0 0.0
  %1304 = vmatpush.msra.mxu0 0.0
  %1305 = vmatpush.msra.mxu0 0.0
  %1306 = vmatpush.msra.mxu0 0.0
  %1307 = vmatpush.msra.mxu0 0.0
  %1308 = vmatpush.msra.mxu0 0.0
  %1309 = vmatpush.msra.mxu0 0.0
  %1310 = vmatpush.msra.mxu0 0.0
  %1311 = vmatpush.msra.mxu0 0.0
  %1312 = vmatpush.msra.mxu0 0.0
  %1313 = vmatpush.msra.mxu0 0.0
  %1314 = vmatpush.msra.mxu0 %v745
  %1315 = vmatpush.msra.mxu0 %v744
  %1316 = vmatpush.msra.mxu0 %v743
  %1317 = vmatpush.msra.mxu0 %v742
  %1318 = vmatmul.f32.gmra.mxu0 %v1255
  %v1319 = vpop.f32.mrf.mxu0
  %v1320 = vadd.f32 %v1207, %v1319
  %1321 = vmatmul.f32.gmra.mxu0 %v1258
  %v1322 = vpop.f32.mrf.mxu0
  %v1323 = vadd.f32 %v1210, %v1322
  %1324 = vmatmul.f32.gmra.mxu0 %v1261
  %v1325 = vpop.f32.mrf.mxu0
  %v1326 = vadd.f32 %v1213, %v1325
  %1327 = vmatmul.f32.gmra.mxu0 %v1264
  %v1328 = vpop.f32.mrf.mxu0
  %v1329 = vadd.f32 %v1216, %v1328
  %1330 = vmatmul.f32.gmra.mxu0 %v1267
  %v1331 = vpop.f32.mrf.mxu0
  %v1332 = vadd.f32 %v1219, %v1331
  %1333 = vmatmul.f32.gmra.mxu0 %v1270
  %v1334 = vpop.f32.mrf.mxu0
  %v1335 = vadd.f32 %v1222, %v1334
  %1336 = vmatmul.f32.gmra.mxu0 %v1273
  %v1337 = vpop.f32.mrf.mxu0
  %v1338 = vadd.f32 %v1225, %v1337
  %1339 = vmatmul.f32.gmra.mxu0 %v1276
  %v1340 = vpop.f32.mrf.mxu0
  %v1341 = vadd.f32 %v1228, %v1340
  %1342 = vmatmul.f32.gmra.mxu0 %v1279
  %v1343 = vpop.f32.mrf.mxu0
  %v1344 = vadd.f32 %v1231, %v1343
  %1345 = vmatmul.f32.gmra.mxu0 %v1282
  %v1346 = vpop.f32.mrf.mxu0
  %v1347 = vadd.f32 %v1234, %v1346
  %1348 = vmatmul.f32.gmra.mxu0 %v1285
  %v1349 = vpop.f32.mrf.mxu0
  %v1350 = vadd.f32 %v1237, %v1349
  %1351 = vmatmul.f32.gmra.mxu0 %v1288
  %v1352 = vpop.f32.mrf.mxu0
  %v1353 = vadd.f32 %v1240, %v1352
  %1354 = vmatmul.f32.gmra.mxu0 %v1291
  %v1355 = vpop.f32.mrf.mxu0
  %v1356 = vadd.f32 %v1243, %v1355
  %1357 = vmatmul.f32.gmra.mxu0 %v1294
  %v1358 = vpop.f32.mrf.mxu0
  %v1359 = vadd.f32 %v1246, %v1358
  %1360 = vmatmul.f32.gmra.mxu0 %v1297
  %v1361 = vpop.f32.mrf.mxu0
  %v1362 = vadd.f32 %v1249, %v1361
  %1363 = vmatmul.f32.gmra.mxu0 %v1300
  %v1364 = vpop.f32.mrf.mxu0
  %v1365 = vadd.f32 %v1252, %v1364
  %1366 = vdwg.mxu0
  %v1367 = vld [vmem:[%s1 + $0xc8] sm:$0xff]
  %v1368 = vld [vmem:[%s1 + $0xd0] sm:$0xff]
  %v1369 = vld [vmem:[%s1 + $0xd8] sm:$0xff]
  %v1370 = vld [vmem:[%s1 + $0xe0] sm:$0xff]
  %v1371 = vld [vmem:[%s1] sm:$0x1]
  %v1372 = vperm.slane %v1371, 0
  %v1374 = vsel %vm46, %v1320, 0
  %v1377 = vsel %vm46, %v1323, 0
  %v1380 = vsel %vm46, %v1326, 0
  %v1383 = vsel %vm46, %v1329, 0
  %v1386 = vsel %vm46, %v1332, 0
  %v1389 = vsel %vm46, %v1335, 0
  %v1392 = vsel %vm46, %v1338, 0
  %v1395 = vsel %vm46, %v1341, 0
  %v1398 = vsel %vm46, %v1344, 0
  %v1401 = vsel %vm46, %v1347, 0
  %v1404 = vsel %vm46, %v1350, 0
  %v1407 = vsel %vm46, %v1353, 0
  %v1410 = vsel %vm46, %v1356, 0
  %v1413 = vsel %vm46, %v1359, 0
  %v1416 = vsel %vm46, %v1362, 0
  %v1419 = vsel %vm46, %v1365, 0
  %1421 = vmatpush.msra.mxu0 0.0
  %1422 = vmatpush.msra.mxu0 0.0
  %1423 = vmatpush.msra.mxu0 0.0
  %1424 = vmatpush.msra.mxu0 0.0
  %1425 = vmatpush.msra.mxu0 0.0
  %1426 = vmatpush.msra.mxu0 0.0
  %1427 = vmatpush.msra.mxu0 0.0
  %1428 = vmatpush.msra.mxu0 0.0
  %1429 = vmatpush.msra.mxu0 0.0
  %1430 = vmatpush.msra.mxu0 0.0
  %1431 = vmatpush.msra.mxu0 0.0
  %1432 = vmatpush.msra.mxu0 0.0
  %1433 = vmatpush.msra.mxu0 %v1370
  %1434 = vmatpush.msra.mxu0 %v1369
  %1435 = vmatpush.msra.mxu0 %v1368
  %1436 = vmatpush.msra.mxu0 %v1367
  %1437 = vmatmul.f32.gmra.mxu0 %v1374
  %v1438 = vpop.f32.mrf.mxu0
  %v1439 = vadd.f32 %v1372, %v1438
  %1440 = vmatmul.f32.gmra.mxu0 %v1377
  %v1441 = vpop.f32.mrf.mxu0
  %v1442 = vadd.f32 %v1372, %v1441
  %1443 = vmatmul.f32.gmra.mxu0 %v1380
  %v1444 = vpop.f32.mrf.mxu0
  %v1445 = vadd.f32 %v1372, %v1444
  %1446 = vmatmul.f32.gmra.mxu0 %v1383
  %v1447 = vpop.f32.mrf.mxu0
  %v1448 = vadd.f32 %v1372, %v1447
  %1449 = vmatmul.f32.gmra.mxu0 %v1386
  %v1450 = vpop.f32.mrf.mxu0
  %v1451 = vadd.f32 %v1372, %v1450
  %1452 = vmatmul.f32.gmra.mxu0 %v1389
  %v1453 = vpop.f32.mrf.mxu0
  %v1454 = vadd.f32 %v1372, %v1453
  %1455 = vmatmul.f32.gmra.mxu0 %v1392
  %v1456 = vpop.f32.mrf.mxu0
  %v1457 = vadd.f32 %v1372, %v1456
  %1458 = vmatmul.f32.gmra.mxu0 %v1395
  %v1459 = vpop.f32.mrf.mxu0
  %v1460 = vadd.f32 %v1372, %v1459
  %1461 = vmatmul.f32.gmra.mxu0 %v1398
  %v1462 = vpop.f32.mrf.mxu0
  %v1463 = vadd.f32 %v1372, %v1462
  %1464 = vmatmul.f32.gmra.mxu0 %v1401
  %v1465 = vpop.f32.mrf.mxu0
  %v1466 = vadd.f32 %v1372, %v1465
  %1467 = vmatmul.f32.gmra.mxu0 %v1404
  %v1468 = vpop.f32.mrf.mxu0
  %v1469 = vadd.f32 %v1372, %v1468
  %1470 = vmatmul.f32.gmra.mxu0 %v1407
  %v1471 = vpop.f32.mrf.mxu0
  %v1472 = vadd.f32 %v1372, %v1471
  %1473 = vmatmul.f32.gmra.mxu0 %v1410
  %v1474 = vpop.f32.mrf.mxu0
  %v1475 = vadd.f32 %v1372, %v1474
  %1476 = vmatmul.f32.gmra.mxu0 %v1413
  %v1477 = vpop.f32.mrf.mxu0
  %v1478 = vadd.f32 %v1372, %v1477
  %1479 = vmatmul.f32.gmra.mxu0 %v1416
  %v1480 = vpop.f32.mrf.mxu0
  %v1481 = vadd.f32 %v1372, %v1480
  %1482 = vmatmul.f32.gmra.mxu0 %v1419
  %v1483 = vpop.f32.mrf.mxu0
  %v1484 = vadd.f32 %v1372, %v1483
  %1485 = vdwg.mxu0
  %v1486 = vtanh.pop %v1439
  %v1487 = vtanh.pop %v1442
  %v1488 = vtanh.pop %v1445
  %v1489 = vtanh.pop %v1448
  %v1490 = vtanh.pop %v1451
  %v1491 = vtanh.pop %v1454
  %v1492 = vtanh.pop %v1457
  %v1493 = vtanh.pop %v1460
  %v1494 = vtanh.pop %v1463
  %v1495 = vtanh.pop %v1466
  %v1496 = vtanh.pop %v1469
  %v1497 = vtanh.pop %v1472
  %v1498 = vtanh.pop %v1475
  %v1499 = vtanh.pop %v1478
  %v1500 = vtanh.pop %v1481
  %v1501 = vtanh.pop %v1484
  %v1502 = vld [vmem:[%s1 + $0x1] sm:$0x1]
  %vm1503 = vcmask 130048
  %v1505 = vsel %vm1503, %v1502, 0
  %v1508 = vsel %vm1503, %v1486, 0
  %v1511 = vsel %vm1503, %v1487, 0
  %v1514 = vsel %vm1503, %v1488, 0
  %v1517 = vsel %vm1503, %v1489, 0
  %v1520 = vsel %vm1503, %v1490, 0
  %v1523 = vsel %vm1503, %v1491, 0
  %v1526 = vsel %vm1503, %v1492, 0
  %v1529 = vsel %vm1503, %v1493, 0
  %v1532 = vsel %vm1503, %v1494, 0
  %v1535 = vsel %vm1503, %v1495, 0
  %v1538 = vsel %vm1503, %v1496, 0
  %v1541 = vsel %vm1503, %v1497, 0
  %v1544 = vsel %vm1503, %v1498, 0
  %v1547 = vsel %vm1503, %v1499, 0
  %v1550 = vsel %vm1503, %v1500, 0
  %v1553 = vsel %vm1503, %v1501, 0
  %1555 = vmatpush.xpose.msra.mxu0 %v1553
  %1556 = vmatpush.xpose.msra.mxu0 %v1550
  %1557 = vmatpush.xpose.msra.mxu0 %v1547
  %1558 = vmatpush.xpose.msra.mxu0 %v1544
  %1559 = vmatpush.xpose.msra.mxu0 %v1541
  %1560 = vmatpush.xpose.msra.mxu0 %v1538
  %1561 = vmatpush.xpose.msra.mxu0 %v1535
  %1562 = vmatpush.xpose.msra.mxu0 %v1532
  %1563 = vmatpush.xpose.msra.mxu0 %v1529
  %1564 = vmatpush.xpose.msra.mxu0 %v1526
  %1565 = vmatpush.xpose.msra.mxu0 %v1523
  %1566 = vmatpush.xpose.msra.mxu0 %v1520
  %1567 = vmatpush.xpose.msra.mxu0 %v1517
  %1568 = vmatpush.xpose.msra.mxu0 %v1514
  %1569 = vmatpush.xpose.msra.mxu0 %v1511
  %1570 = vmatpush.xpose.msra.mxu0 %v1508
  %1571 = vmatmul.f32.gmra.mxu0 %v1505
  %v1572 = vpop.f32.mrf.mxu0
  %v1573 = vadd.f32 0.0, %v1572
  %1574 = vdwg.mxu0
  %v1575 = vld [vmem:[%s1 + $0x8] sm:$0xff]
  %v1576 = vld [vmem:[%s1 + $0x10] sm:$0xff]
  %v1577 = vperm.slane %v1573, 0
  %v1578 = vadd.f32 %v1577, %v1575
  %v1579 = vadd.f32 %v1577, %v1576
  %1580 = vmax.xlane.f32.xlu0 %v1578
  %v1581 = vpop.xlane.xlu0 %1580
  %1582 = vmax.xlane.f32.xlu0 %v1579
  %v1583 = vpop.xlane.xlu0 %1582
  %v1584 = vsub.f32 %v1578, %v1581
  %v1585 = vsub.f32 %v1579, %v1583
  %v1586 = vmul.f32 %v1584, 1.442695
  %v1587 = vpow.pop %v1586
  %v1588 = vmul.f32 %v1585, 1.442695
  %v1589 = vpow.pop %v1588
  %1590 = vadd.xlane.f32.xlu0 %v1587
  %v1591 = vpop.xlane.xlu0 %1590
  %1592 = vadd.xlane.f32.xlu0 %v1589
  %v1593 = vpop.xlane.xlu0 %1592
  %v1594 = vrcp.pop %v1591
  %v1595 = vrcp.pop %v1593
  %v1596 = vmul.f32 %v1587, %v1594
  %v1597 = vmul.f32 %v1589, %v1595
  %1598 = vmatpush.msra.mxu0 %v1365
  %1599 = vmatpush.msra.mxu0 %v1362
  %1600 = vmatpush.msra.mxu0 %v1359
  %1601 = vmatpush.msra.mxu0 %v1356
  %1602 = vmatpush.msra.mxu0 %v1353
  %1603 = vmatpush.msra.mxu0 %v1350
  %1604 = vmatpush.msra.mxu0 %v1347
  %1605 = vmatpush.msra.mxu0 %v1344
  %1606 = vmatpush.msra.mxu0 %v1341
  %1607 = vmatpush.msra.mxu0 %v1338
  %1608 = vmatpush.msra.mxu0 %v1335
  %1609 = vmatpush.msra.mxu0 %v1332
  %1610 = vmatpush.msra.mxu0 %v1329
  %1611 = vmatpush.msra.mxu0 %v1326
  %1612 = vmatpush.msra.mxu0 %v1323
  %1613 = vmatpush.msra.mxu0 %v1320
  %1614 = vmatmul.f32.gmra.mxu0 %v1596
  %v1615 = vpop.f32.mrf.mxu0
  %v1616 = vadd.f32 0.0, %v1615
  %1617 = vmatmul.f32.gmra.mxu0 %v1597
  %v1618 = vpop.f32.mrf.mxu0
  %v1619 = vadd.f32 0.0, %v1618
  %1620 = vdwg.mxu0
  %v1621 = vld [vmem:[%s2] sm:$0xff]
  %v1623 = vsel %vm46, %v1616, 0
  %v1626 = vsel %vm46, %v1619, 0
  %1628 = vmatpush.xpose.msra.mxu0 0.0
  %1629 = vmatpush.xpose.msra.mxu0 0.0
  %1630 = vmatpush.xpose.msra.mxu0 0.0
  %1631 = vmatpush.xpose.msra.mxu0 0.0
  %1632 = vmatpush.xpose.msra.mxu0 0.0
  %1633 = vmatpush.xpose.msra.mxu0 0.0
  %1634 = vmatpush.xpose.msra.mxu0 0.0
  %1635 = vmatpush.xpose.msra.mxu0 0.0
  %1636 = vmatpush.xpose.msra.mxu0 0.0
  %1637 = vmatpush.xpose.msra.mxu0 0.0
  %1638 = vmatpush.xpose.msra.mxu0 0.0
  %1639 = vmatpush.xpose.msra.mxu0 0.0
  %1640 = vmatpush.xpose.msra.mxu0 0.0
  %1641 = vmatpush.xpose.msra.mxu0 0.0
  %1642 = vmatpush.xpose.msra.mxu0 0.0
  %1643 = vmatpush.xpose.msra.mxu0 %v1626
  %1644 = vmatmul.f32.gmra.mxu0 %v1623
  %v1645 = vpop.f32.mrf.mxu0
  %v1646 = vadd.f32 %v1621, %v1645
  %1647 = vdwg.mxu0
  %vm1648 = vcmask 64512
  %v1649 = vsel %vm1648, %v1646, -inf
  %1650 = vmax.xlane.f32.xlu0 %v1649
  %v1651 = vpop.xlane.xlu0 %1650
  %v1652 = vlaneseq
  %v1653 = vand.u32 %v1652, 127
  %vm1654 = vcmp.eq.f32.partialorder %v1646, %v1651
  %v1655 = vsel %vm1654, %v1653, 8
  %v1656 = vsel %vm1648, %v1655, 2147483647
  %v1657 = vand.u32 %v1656, 65535
  %v1658 = vshra.s32 %v1656, 16
  %v1659 = vcvt.s32.f32 %v1657
  %v1660 = vcvt.s32.f32 %v1658
  %1661 = vmin.xlane.f32.xlu0 %v1660
  %v1662 = vpop.xlane.xlu0 %1661
  %vm1663 = vcmp.eq.f32.partialorder %v1660, %v1662
  %v1664 = vsel %vm1663, %v1659, inf
  %1665 = vmin.xlane.f32.xlu0 %v1664
  %v1666 = vpop.xlane.xlu0 %1665
  %v1667 = vcvt.f32.s32 %v1666
  %v1668 = vcvt.f32.s32 %v1662
  %v1669 = vshll.u32 %v1668, 16
  %v1670 = vadd.s32 %v1669, %v1667
  %vm1671 = vcmp.eq.s32.totalorder %v1653, %v1670
  %v1672 = vsel %vm1671, 1, 0
  %v1673 = vcvt.s32.f32 %v1672
  %v1674 = vld [vmem:[%s1 + $0xe8] sm:$0xff]
  %v1675 = vld [vmem:[%s1 + $0xf0] sm:$0xff]
  %v1676 = vld [vmem:[%s1 + $0xf8] sm:$0xff]
  %v1677 = vld [vmem:[%s1 + $0x100] sm:$0xff]
  %v1678 = vld [vmem:[%s1 + $0x108] sm:$0xff]
  %v1679 = vld [vmem:[%s1 + $0x110] sm:$0xff]
  %v1680 = vld [vmem:[%s1 + $0x118] sm:$0xff]
  %v1681 = vld [vmem:[%s1 + $0x120] sm:$0xff]
  %v1682 = vld [vmem:[%s1 + $0x128] sm:$0xff]
  %v1683 = vld [vmem:[%s1 + $0x130] sm:$0xff]
  %v1684 = vld [vmem:[%s1 + $0x138] sm:$0xff]
  %v1685 = vld [vmem:[%s1 + $0x140] sm:$0xff]
  %v1686 = vld [vmem:[%s1 + $0x148] sm:$0xff]
  %v1687 = vld [vmem:[%s1 + $0x150] sm:$0xff]
  %v1688 = vld [vmem:[%s1 + $0x158] sm:$0xff]
  %v1689 = vld [vmem:[%s1 + $0x160] sm:$0xff]
  %v1691 = vsel %vm1648, %v1674, 0
  %v1694 = vsel %vm1648, %v1675, 0
  %v1697 = vsel %vm1648, %v1676, 0
  %v1700 = vsel %vm1648, %v1677, 0
  %v1703 = vsel %vm1648, %v1678, 0
  %v1706 = vsel %vm1648, %v1679, 0
  %v1709 = vsel %vm1648, %v1680, 0
  %v1712 = vsel %vm1648, %v1681, 0
  %v1715 = vsel %vm1648, %v1673, 0
  %1717 = vmatpush.xpose.msra.mxu0 0.0
  %1718 = vmatpush.xpose.msra.mxu0 0.0
  %1719 = vmatpush.xpose.msra.mxu0 0.0
  %1720 = vmatpush.xpose.msra.mxu0 0.0
  %1721 = vmatpush.xpose.msra.mxu0 0.0
  %1722 = vmatpush.xpose.msra.mxu0 0.0
  %1723 = vmatpush.xpose.msra.mxu0 0.0
  %1724 = vmatpush.xpose.msra.mxu0 0.0
  %1725 = vmatpush.xpose.msra.mxu0 0.0
  %1726 = vmatpush.xpose.msra.mxu0 0.0
  %1727 = vmatpush.xpose.msra.mxu0 0.0
  %1728 = vmatpush.xpose.msra.mxu0 0.0
  %1729 = vmatpush.xpose.msra.mxu0 0.0
  %1730 = vmatpush.xpose.msra.mxu0 0.0
  %1731 = vmatpush.xpose.msra.mxu0 0.0
  %1732 = vmatpush.xpose.msra.mxu0 %v1715
  %1733 = vmatmul.f32.gmra.mxu0 %v1691
  %v1734 = vpop.f32.mrf.mxu0
  %v1735 = vadd.f32 0.0, %v1734
  %1736 = vmatmul.f32.gmra.mxu0 %v1694
  %v1737 = vpop.f32.mrf.mxu0
  %v1738 = vadd.f32 0.0, %v1737
  %1739 = vmatmul.f32.gmra.mxu0 %v1697
  %v1740 = vpop.f32.mrf.mxu0
  %v1741 = vadd.f32 0.0, %v1740
  %1742 = vmatmul.f32.gmra.mxu0 %v1700
  %v1743 = vpop.f32.mrf.mxu0
  %v1744 = vadd.f32 0.0, %v1743
  %1745 = vmatmul.f32.gmra.mxu0 %v1703
  %v1746 = vpop.f32.mrf.mxu0
  %v1747 = vadd.f32 0.0, %v1746
  %1748 = vmatmul.f32.gmra.mxu0 %v1706
  %v1749 = vpop.f32.mrf.mxu0
  %v1750 = vadd.f32 0.0, %v1749
  %1751 = vmatmul.f32.gmra.mxu0 %v1709
  %v1752 = vpop.f32.mrf.mxu0
  %v1753 = vadd.f32 0.0, %v1752
  %1754 = vmatmul.f32.gmra.mxu0 %v1712
  %v1755 = vpop.f32.mrf.mxu0
  %v1756 = vadd.f32 0.0, %v1755
  %1757 = vdwg.mxu0
  %v1759 = vsel %vm1648, %v1735, 0
  %v1762 = vsel %vm1648, %v1738, 0
  %v1765 = vsel %vm1648, %v1741, 0
  %v1768 = vsel %vm1648, %v1744, 0
  %v1771 = vsel %vm1648, %v1747, 0
  %v1774 = vsel %vm1648, %v1750, 0
  %v1777 = vsel %vm1648, %v1753, 0
  %v1780 = vsel %vm1648, %v1756, 0
  %v1783 = vsel %vm1648, %v1682, 0
  %v1786 = vsel %vm1648, %v1683, 0
  %v1789 = vsel %vm1648, %v1684, 0
  %v1792 = vsel %vm1648, %v1685, 0
  %v1795 = vsel %vm1648, %v1686, 0
  %v1798 = vsel %vm1648, %v1687, 0
  %v1801 = vsel %vm1648, %v1688, 0
  %v1804 = vsel %vm1648, %v1689, 0
  %1806 = vmatpush.xpose.msra.mxu0 %v1804
  %1807 = vmatpush.xpose.msra.mxu0 %v1801
  %1808 = vmatpush.xpose.msra.mxu0 %v1798
  %1809 = vmatpush.xpose.msra.mxu0 %v1795
  %1810 = vmatpush.xpose.msra.mxu0 %v1792
  %1811 = vmatpush.xpose.msra.mxu0 %v1789
  %1812 = vmatpush.xpose.msra.mxu0 %v1786
  %1813 = vmatpush.xpose.msra.mxu0 %v1783
  %1814 = vmatpush.xpose.msra.mxu0 %v1712
  %1815 = vmatpush.xpose.msra.mxu0 %v1709
  %1816 = vmatpush.xpose.msra.mxu0 %v1706
  %1817 = vmatpush.xpose.msra.mxu0 %v1703
  %1818 = vmatpush.xpose.msra.mxu0 %v1700
  %1819 = vmatpush.xpose.msra.mxu0 %v1697
  %1820 = vmatpush.xpose.msra.mxu0 %v1694
  %1821 = vmatpush.xpose.msra.mxu0 %v1691
  %1822 = vmatmul.f32.gmra.mxu0 %v1759
  %v1823 = vpop.f32.mrf.mxu0
  %v1824 = vadd.f32 0.0, %v1823
  %1825 = vmatmul.f32.gmra.mxu0 %v1762
  %v1826 = vpop.f32.mrf.mxu0
  %v1827 = vadd.f32 0.0, %v1826
  %1828 = vmatmul.f32.gmra.mxu0 %v1765
  %v1829 = vpop.f32.mrf.mxu0
  %v1830 = vadd.f32 0.0, %v1829
  %1831 = vmatmul.f32.gmra.mxu0 %v1768
  %v1832 = vpop.f32.mrf.mxu0
  %v1833 = vadd.f32 0.0, %v1832
  %1834 = vmatmul.f32.gmra.mxu0 %v1771
  %v1835 = vpop.f32.mrf.mxu0
  %v1836 = vadd.f32 0.0, %v1835
  %1837 = vmatmul.f32.gmra.mxu0 %v1774
  %v1838 = vpop.f32.mrf.mxu0
  %v1839 = vadd.f32 0.0, %v1838
  %1840 = vmatmul.f32.gmra.mxu0 %v1777
  %v1841 = vpop.f32.mrf.mxu0
  %v1842 = vadd.f32 0.0, %v1841
  %1843 = vmatmul.f32.gmra.mxu0 %v1780
  %v1844 = vpop.f32.mrf.mxu0
  %v1845 = vadd.f32 0.0, %v1844
  %1846 = vdwg.mxu0
  %v1848 = vsel %vm46, %v279, 0
  %v1851 = vsel %vm46, %v280, 0
  %v1854 = vsel %vm46, %v281, 0
  %v1857 = vsel %vm46, %v282, 0
  %v1860 = vsel %vm46, %v283, 0
  %v1863 = vsel %vm46, %v284, 0
  %v1866 = vsel %vm46, %v285, 0
  %v1869 = vsel %vm46, %v286, 0
  %v1872 = vsel %vm46, %v271, 0
  %v1875 = vsel %vm46, %v272, 0
  %v1878 = vsel %vm46, %v273, 0
  %v1881 = vsel %vm46, %v274, 0
  %v1884 = vsel %vm46, %v275, 0
  %v1887 = vsel %vm46, %v276, 0
  %v1890 = vsel %vm46, %v277, 0
  %v1893 = vsel %vm46, %v278, 0
  %1895 = vmatpush.xpose.msra.mxu0 %v1893
  %1896 = vmatpush.xpose.msra.mxu0 %v1890
  %1897 = vmatpush.xpose.msra.mxu0 %v1887
  %1898 = vmatpush.xpose.msra.mxu0 %v1884
  %1899 = vmatpush.xpose.msra.mxu0 %v1881
  %1900 = vmatpush.xpose.msra.mxu0 %v1878
  %1901 = vmatpush.xpose.msra.mxu0 %v1875
  %1902 = vmatpush.xpose.msra.mxu0 %v1872
  %1903 = vmatpush.xpose.msra.mxu0 %v1893
  %1904 = vmatpush.xpose.msra.mxu0 %v1890
  %1905 = vmatpush.xpose.msra.mxu0 %v1887
  %1906 = vmatpush.xpose.msra.mxu0 %v1884
  %1907 = vmatpush.xpose.msra.mxu0 %v1881
  %1908 = vmatpush.xpose.msra.mxu0 %v1878
  %1909 = vmatpush.xpose.msra.mxu0 %v1875
  %1910 = vmatpush.xpose.msra.mxu0 %v1872
  %1911 = vmatmul.f32.gmra.mxu0 %v1848
  %v1912 = vpop.f32.mrf.mxu0
  %v1913 = vadd.f32 0.0, %v1912
  %1914 = vmatmul.f32.gmra.mxu0 %v1851
  %v1915 = vpop.f32.mrf.mxu0
  %v1916 = vadd.f32 0.0, %v1915
  %1917 = vmatmul.f32.gmra.mxu0 %v1854
  %v1918 = vpop.f32.mrf.mxu0
  %v1919 = vadd.f32 0.0, %v1918
  %1920 = vmatmul.f32.gmra.mxu0 %v1857
  %v1921 = vpop.f32.mrf.mxu0
  %v1922 = vadd.f32 0.0, %v1921
  %1923 = vmatmul.f32.gmra.mxu0 %v1860
  %v1924 = vpop.f32.mrf.mxu0
  %v1925 = vadd.f32 0.0, %v1924
  %1926 = vmatmul.f32.gmra.mxu0 %v1863
  %v1927 = vpop.f32.mrf.mxu0
  %v1928 = vadd.f32 0.0, %v1927
  %1929 = vmatmul.f32.gmra.mxu0 %v1866
  %v1930 = vpop.f32.mrf.mxu0
  %v1931 = vadd.f32 0.0, %v1930
  %1932 = vmatmul.f32.gmra.mxu0 %v1869
  %v1933 = vpop.f32.mrf.mxu0
  %v1934 = vadd.f32 0.0, %v1933
  %1935 = vdwg.mxu0
  %v1936 = vsub.f32 %v1913, 10000.0
  %v1937 = vsub.f32 %v1916, 10000.0
  %v1938 = vsub.f32 %v1919, 10000.0
  %v1939 = vsub.f32 %v1922, 10000.0
  %v1940 = vsub.f32 %v1925, 10000.0
  %v1941 = vsub.f32 %v1928, 10000.0
  %v1942 = vsub.f32 %v1931, 10000.0
  %v1943 = vsub.f32 %v1934, 10000.0
  %v1944 = vmul.f32 %v1824, %v1936
  %v1945 = vmul.f32 %v1827, %v1937
  %v1946 = vmul.f32 %v1830, %v1938
  %v1947 = vmul.f32 %v1833, %v1939
  %v1948 = vmul.f32 %v1836, %v1940
  %v1949 = vmul.f32 %v1839, %v1941
  %v1950 = vmul.f32 %v1842, %v1942
  %v1951 = vmul.f32 %v1845, %v1943
  %v1952 = vadd.f32 %v1944, 10000.0
  %v1953 = vadd.f32 %v1945, 10000.0
  %v1954 = vadd.f32 %v1946, 10000.0
  %v1955 = vadd.f32 %v1947, 10000.0
  %v1956 = vadd.f32 %v1948, 10000.0
  %v1957 = vadd.f32 %v1949, 10000.0
  %v1958 = vadd.f32 %v1950, 10000.0
  %v1959 = vadd.f32 %v1951, 10000.0
  %v1960 = vld [vmem:[%s1 + $0x18] sm:$0x1]
  %v1961 = vld [vmem:[%s1 + $0x28] sm:$0x1]
  %v1962 = vld [vmem:[%s1 + $0x38] sm:$0x1]
  %v1963 = vperm.slane %v1960, 0
  %v1964 = vsub.f32 %v1952, %v1963
  %v1965 = vsub.f32 %v1953, %v1963
  %v1966 = vsub.f32 %v1954, %v1963
  %v1967 = vsub.f32 %v1955, %v1963
  %v1968 = vsub.f32 %v1956, %v1963
  %v1969 = vsub.f32 %v1957, %v1963
  %v1970 = vsub.f32 %v1958, %v1963
  %v1971 = vsub.f32 %v1959, %v1963
  %v1972 = vmul.f32 %v1964, %v1964
  %v1973 = vmul.f32 %v1965, %v1965
  %v1974 = vmul.f32 %v1966, %v1966
  %v1975 = vmul.f32 %v1967, %v1967
  %v1976 = vmul.f32 %v1968, %v1968
  %v1977 = vmul.f32 %v1969, %v1969
  %v1978 = vmul.f32 %v1970, %v1970
  %v1979 = vmul.f32 %v1971, %v1971
  %v1980 = vperm.slane %v1961, 0
  %v1981 = vmul.f32 %v1972, %v1980
  %v1982 = vmul.f32 %v1973, %v1980
  %v1983 = vmul.f32 %v1974, %v1980
  %v1984 = vmul.f32 %v1975, %v1980
  %v1985 = vmul.f32 %v1976, %v1980
  %v1986 = vmul.f32 %v1977, %v1980
  %v1987 = vmul.f32 %v1978, %v1980
  %v1988 = vmul.f32 %v1979, %v1980
  %v1989 = vmul.f32 %v1981, 1.442695
  %v1990 = vpow.pop %v1989
  %v1991 = vmul.f32 %v1982, 1.442695
  %v1992 = vpow.pop %v1991
  %v1993 = vmul.f32 %v1983, 1.442695
  %v1994 = vpow.pop %v1993
  %v1995 = vmul.f32 %v1984, 1.442695
  %v1996 = vpow.pop %v1995
  %v1997 = vmul.f32 %v1985, 1.442695
  %v1998 = vpow.pop %v1997
  %v1999 = vmul.f32 %v1986, 1.442695
  %v2000 = vpow.pop %v1999
  %v2001 = vmul.f32 %v1987, 1.442695
  %v2002 = vpow.pop %v2001
  %v2003 = vmul.f32 %v1988, 1.442695
  %v2004 = vpow.pop %v2003
  %v2005 = vadd.f32 %v1990, %v1992
  %v2006 = vadd.f32 %v2005, %v1994
  %v2007 = vadd.f32 %v2006, %v1996
  %v2008 = vadd.f32 %v2007, %v1998
  %v2009 = vadd.f32 %v2008, %v2000
  %v2010 = vadd.f32 %v2009, %v2002
  %v2011 = vadd.f32 %v2010, %v2004
  %v2012 = vrot.slane %v2011, 4
  %v2013 = vadd.f32 %v2011, %v2012
  %v2014 = vrot.slane %v2013, 2
  %v2015 = vadd.f32 %v2013, %v2014
  %v2016 = vrot.slane %v2015, 1
  %v2017 = vadd.f32 %v2015, %v2016
  %v2018 = vmax.f32 %v2017, 1e-10
  %v2019 = vlog2.pop %v2018
  %v2020 = vmul.f32 %v2019, 0.6931472
  %v2021 = vmul.f32 %v1962, %v2020
  %v2022 = vadd.f32 %v2021, 0.0
  %v2023 = vld [vmem:[%s1 + $0x19] sm:$0x1]
  %v2024 = vld [vmem:[%s1 + $0x29] sm:$0x1]
  %v2025 = vld [vmem:[%s1 + $0x39] sm:$0x1]
  %v2026 = vperm.slane %v2023, 0
  %v2027 = vsub.f32 %v1952, %v2026
  %v2028 = vsub.f32 %v1953, %v2026
  %v2029 = vsub.f32 %v1954, %v2026
  %v2030 = vsub.f32 %v1955, %v2026
  %v2031 = vsub.f32 %v1956, %v2026
  %v2032 = vsub.f32 %v1957, %v2026
  %v2033 = vsub.f32 %v1958, %v2026
  %v2034 = vsub.f32 %v1959, %v2026
  %v2035 = vmul.f32 %v2027, %v2027
  %v2036 = vmul.f32 %v2028, %v2028
  %v2037 = vmul.f32 %v2029, %v2029
  %v2038 = vmul.f32 %v2030, %v2030
  %v2039 = vmul.f32 %v2031, %v2031
  %v2040 = vmul.f32 %v2032, %v2032
  %v2041 = vmul.f32 %v2033, %v2033
  %v2042 = vmul.f32 %v2034, %v2034
  %v2043 = vperm.slane %v2024, 0
  %v2044 = vmul.f32 %v2035, %v2043
  %v2045 = vmul.f32 %v2036, %v2043
  %v2046 = vmul.f32 %v2037, %v2043
  %v2047 = vmul.f32 %v2038, %v2043
  %v2048 = vmul.f32 %v2039, %v2043
  %v2049 = vmul.f32 %v2040, %v2043
  %v2050 = vmul.f32 %v2041, %v2043
  %v2051 = vmul.f32 %v2042, %v2043
  %v2052 = vmul.f32 %v2044, 1.442695
  %v2053 = vpow.pop %v2052
  %v2054 = vmul.f32 %v2045, 1.442695
  %v2055 = vpow.pop %v2054
  %v2056 = vmul.f32 %v2046, 1.442695
  %v2057 = vpow.pop %v2056
  %v2058 = vmul.f32 %v2047, 1.442695
  %v2059 = vpow.pop %v2058
  %v2060 = vmul.f32 %v2048, 1.442695
  %v2061 = vpow.pop %v2060
  %v2062 = vmul.f32 %v2049, 1.442695
  %v2063 = vpow.pop %v2062
  %v2064 = vmul.f32 %v2050, 1.442695
  %v2065 = vpow.pop %v2064
  %v2066 = vmul.f32 %v2051, 1.442695
  %v2067 = vpow.pop %v2066
  %v2068 = vadd.f32 %v2053, %v2055
  %v2069 = vadd.f32 %v2068, %v2057
  %v2070 = vadd.f32 %v2069, %v2059
  %v2071 = vadd.f32 %v2070, %v2061
  %v2072 = vadd.f32 %v2071, %v2063
  %v2073 = vadd.f32 %v2072, %v2065
  %v2074 = vadd.f32 %v2073, %v2067
  %v2075 = vrot.slane %v2074, 4
  %v2076 = vadd.f32 %v2074, %v2075
  %v2077 = vrot.slane %v2076, 2
  %v2078 = vadd.f32 %v2076, %v2077
  %v2079 = vrot.slane %v2078, 1
  %v2080 = vadd.f32 %v2078, %v2079
  %v2081 = vmax.f32 %v2080, 1e-10
  %v2082 = vlog2.pop %v2081
  %v2083 = vmul.f32 %v2082, 0.6931472
  %v2084 = vmul.f32 %v2025, %v2083
  %v2085 = vadd.f32 %v2022, %v2084
  %v2086 = vld [vmem:[%s1 + $0x1a] sm:$0x1]
  %v2087 = vld [vmem:[%s1 + $0x2a] sm:$0x1]
  %v2088 = vld [vmem:[%s1 + $0x3a] sm:$0x1]
  %v2089 = vperm.slane %v2086, 0
  %v2090 = vsub.f32 %v1952, %v2089
  %v2091 = vsub.f32 %v1953, %v2089
  %v2092 = vsub.f32 %v1954, %v2089
  %v2093 = vsub.f32 %v1955, %v2089
  %v2094 = vsub.f32 %v1956, %v2089
  %v2095 = vsub.f32 %v1957, %v2089
  %v2096 = vsub.f32 %v1958, %v2089
  %v2097 = vsub.f32 %v1959, %v2089
  %v2098 = vmul.f32 %v2090, %v2090
  %v2099 = vmul.f32 %v2091, %v2091
  %v2100 = vmul.f32 %v2092, %v2092
  %v2101 = vmul.f32 %v2093, %v2093
  %v2102 = vmul.f32 %v2094, %v2094
  %v2103 = vmul.f32 %v2095, %v2095
  %v2104 = vmul.f32 %v2096, %v2096
  %v2105 = vmul.f32 %v2097, %v2097
  %v2106 = vperm.slane %v2087, 0
  %v2107 = vmul.f32 %v2098, %v2106
  %v2108 = vmul.f32 %v2099, %v2106
  %v2109 = vmul.f32 %v2100, %v2106
  %v2110 = vmul.f32 %v2101, %v2106
  %v2111 = vmul.f32 %v2102, %v2106
  %v2112 = vmul.f32 %v2103, %v2106
  %v2113 = vmul.f32 %v2104, %v2106
  %v2114 = vmul.f32 %v2105, %v2106
  %v2115 = vmul.f32 %v2107, 1.442695
  %v2116 = vpow.pop %v2115
  %v2117 = vmul.f32 %v2108, 1.442695
  %v2118 = vpow.pop %v2117
  %v2119 = vmul.f32 %v2109, 1.442695
  %v2120 = vpow.pop %v2119
  %v2121 = vmul.f32 %v2110, 1.442695
  %v2122 = vpow.pop %v2121
  %v2123 = vmul.f32 %v2111, 1.442695
  %v2124 = vpow.pop %v2123
  %v2125 = vmul.f32 %v2112, 1.442695
  %v2126 = vpow.pop %v2125
  %v2127 = vmul.f32 %v2113, 1.442695
  %v2128 = vpow.pop %v2127
  %v2129 = vmul.f32 %v2114, 1.442695
  %v2130 = vpow.pop %v2129
  %v2131 = vadd.f32 %v2116, %v2118
  %v2132 = vadd.f32 %v2131, %v2120
  %v2133 = vadd.f32 %v2132, %v2122
  %v2134 = vadd.f32 %v2133, %v2124
  %v2135 = vadd.f32 %v2134, %v2126
  %v2136 = vadd.f32 %v2135, %v2128
  %v2137 = vadd.f32 %v2136, %v2130
  %v2138 = vrot.slane %v2137, 4
  %v2139 = vadd.f32 %v2137, %v2138
  %v2140 = vrot.slane %v2139, 2
  %v2141 = vadd.f32 %v2139, %v2140
  %v2142 = vrot.slane %v2141, 1
  %v2143 = vadd.f32 %v2141, %v2142
  %v2144 = vmax.f32 %v2143, 1e-10
  %v2145 = vlog2.pop %v2144
  %v2146 = vmul.f32 %v2145, 0.6931472
  %v2147 = vmul.f32 %v2088, %v2146
  %v2148 = vadd.f32 %v2085, %v2147
  %v2149 = vld [vmem:[%s1 + $0x1b] sm:$0x1]
  %v2150 = vld [vmem:[%s1 + $0x2b] sm:$0x1]
  %v2151 = vld [vmem:[%s1 + $0x3b] sm:$0x1]
  %v2152 = vperm.slane %v2149, 0
  %v2153 = vsub.f32 %v1952, %v2152
  %v2154 = vsub.f32 %v1953, %v2152
  %v2155 = vsub.f32 %v1954, %v2152
  %v2156 = vsub.f32 %v1955, %v2152
  %v2157 = vsub.f32 %v1956, %v2152
  %v2158 = vsub.f32 %v1957, %v2152
  %v2159 = vsub.f32 %v1958, %v2152
  %v2160 = vsub.f32 %v1959, %v2152
  %v2161 = vmul.f32 %v2153, %v2153
  %v2162 = vmul.f32 %v2154, %v2154
  %v2163 = vmul.f32 %v2155, %v2155
  %v2164 = vmul.f32 %v2156, %v2156
  %v2165 = vmul.f32 %v2157, %v2157
  %v2166 = vmul.f32 %v2158, %v2158
  %v2167 = vmul.f32 %v2159, %v2159
  %v2168 = vmul.f32 %v2160, %v2160
  %v2169 = vperm.slane %v2150, 0
  %v2170 = vmul.f32 %v2161, %v2169
  %v2171 = vmul.f32 %v2162, %v2169
  %v2172 = vmul.f32 %v2163, %v2169
  %v2173 = vmul.f32 %v2164, %v2169
  %v2174 = vmul.f32 %v2165, %v2169
  %v2175 = vmul.f32 %v2166, %v2169
  %v2176 = vmul.f32 %v2167, %v2169
  %v2177 = vmul.f32 %v2168, %v2169
  %v2178 = vmul.f32 %v2170, 1.442695
  %v2179 = vpow.pop %v2178
  %v2180 = vmul.f32 %v2171, 1.442695
  %v2181 = vpow.pop %v2180
  %v2182 = vmul.f32 %v2172, 1.442695
  %v2183 = vpow.pop %v2182
  %v2184 = vmul.f32 %v2173, 1.442695
  %v2185 = vpow.pop %v2184
  %v2186 = vmul.f32 %v2174, 1.442695
  %v2187 = vpow.pop %v2186
  %v2188 = vmul.f32 %v2175, 1.442695
  %v2189 = vpow.pop %v2188
  %v2190 = vmul.f32 %v2176, 1.442695
  %v2191 = vpow.pop %v2190
  %v2192 = vmul.f32 %v2177, 1.442695
  %v2193 = vpow.pop %v2192
  %v2194 = vadd.f32 %v2179, %v2181
  %v2195 = vadd.f32 %v2194, %v2183
  %v2196 = vadd.f32 %v2195, %v2185
  %v2197 = vadd.f32 %v2196, %v2187
  %v2198 = vadd.f32 %v2197, %v2189
  %v2199 = vadd.f32 %v2198, %v2191
  %v2200 = vadd.f32 %v2199, %v2193
  %v2201 = vrot.slane %v2200, 4
  %v2202 = vadd.f32 %v2200, %v2201
  %v2203 = vrot.slane %v2202, 2
  %v2204 = vadd.f32 %v2202, %v2203
  %v2205 = vrot.slane %v2204, 1
  %v2206 = vadd.f32 %v2204, %v2205
  %v2207 = vmax.f32 %v2206, 1e-10
  %v2208 = vlog2.pop %v2207
  %v2209 = vmul.f32 %v2208, 0.6931472
  %v2210 = vmul.f32 %v2151, %v2209
  %v2211 = vadd.f32 %v2148, %v2210
  %v2212 = vld [vmem:[%s1 + $0x1c] sm:$0x1]
  %v2213 = vld [vmem:[%s1 + $0x2c] sm:$0x1]
  %v2214 = vld [vmem:[%s1 + $0x3c] sm:$0x1]
  %v2215 = vperm.slane %v2212, 0
  %v2216 = vsub.f32 %v1952, %v2215
  %v2217 = vsub.f32 %v1953, %v2215
  %v2218 = vsub.f32 %v1954, %v2215
  %v2219 = vsub.f32 %v1955, %v2215
  %v2220 = vsub.f32 %v1956, %v2215
  %v2221 = vsub.f32 %v1957, %v2215
  %v2222 = vsub.f32 %v1958, %v2215
  %v2223 = vsub.f32 %v1959, %v2215
  %v2224 = vmul.f32 %v2216, %v2216
  %v2225 = vmul.f32 %v2217, %v2217
  %v2226 = vmul.f32 %v2218, %v2218
  %v2227 = vmul.f32 %v2219, %v2219
  %v2228 = vmul.f32 %v2220, %v2220
  %v2229 = vmul.f32 %v2221, %v2221
  %v2230 = vmul.f32 %v2222, %v2222
  %v2231 = vmul.f32 %v2223, %v2223
  %v2232 = vperm.slane %v2213, 0
  %v2233 = vmul.f32 %v2224, %v2232
  %v2234 = vmul.f32 %v2225, %v2232
  %v2235 = vmul.f32 %v2226, %v2232
  %v2236 = vmul.f32 %v2227, %v2232
  %v2237 = vmul.f32 %v2228, %v2232
  %v2238 = vmul.f32 %v2229, %v2232
  %v2239 = vmul.f32 %v2230, %v2232
  %v2240 = vmul.f32 %v2231, %v2232
  %v2241 = vmul.f32 %v2233, 1.442695
  %v2242 = vpow.pop %v2241
  %v2243 = vmul.f32 %v2234, 1.442695
  %v2244 = vpow.pop %v2243
  %v2245 = vmul.f32 %v2235, 1.442695
  %v2246 = vpow.pop %v2245
  %v2247 = vmul.f32 %v2236, 1.442695
  %v2248 = vpow.pop %v2247
  %v2249 = vmul.f32 %v2237, 1.442695
  %v2250 = vpow.pop %v2249
  %v2251 = vmul.f32 %v2238, 1.442695
  %v2252 = vpow.pop %v2251
  %v2253 = vmul.f32 %v2239, 1.442695
  %v2254 = vpow.pop %v2253
  %v2255 = vmul.f32 %v2240, 1.442695
  %v2256 = vpow.pop %v2255
  %v2257 = vadd.f32 %v2242, %v2244
  %v2258 = vadd.f32 %v2257, %v2246
  %v2259 = vadd.f32 %v2258, %v2248
  %v2260 = vadd.f32 %v2259, %v2250
  %v2261 = vadd.f32 %v2260, %v2252
  %v2262 = vadd.f32 %v2261, %v2254
  %v2263 = vadd.f32 %v2262, %v2256
  %v2264 = vrot.slane %v2263, 4
  %v2265 = vadd.f32 %v2263, %v2264
  %v2266 = vrot.slane %v2265, 2
  %v2267 = vadd.f32 %v2265, %v2266
  %v2268 = vrot.slane %v2267, 1
  %v2269 = vadd.f32 %v2267, %v2268
  %v2270 = vmax.f32 %v2269, 1e-10
  %v2271 = vlog2.pop %v2270
  %v2272 = vmul.f32 %v2271, 0.6931472
  %v2273 = vmul.f32 %v2214, %v2272
  %v2274 = vadd.f32 %v2211, %v2273
  %v2275 = vld [vmem:[%s1 + $0x1d] sm:$0x1]
  %v2276 = vld [vmem:[%s1 + $0x2d] sm:$0x1]
  %v2277 = vld [vmem:[%s1 + $0x3d] sm:$0x1]
  %v2278 = vperm.slane %v2275, 0
  %v2279 = vsub.f32 %v1952, %v2278
  %v2280 = vsub.f32 %v1953, %v2278
  %v2281 = vsub.f32 %v1954, %v2278
  %v2282 = vsub.f32 %v1955, %v2278
  %v2283 = vsub.f32 %v1956, %v2278
  %v2284 = vsub.f32 %v1957, %v2278
  %v2285 = vsub.f32 %v1958, %v2278
  %v2286 = vsub.f32 %v1959, %v2278
  %v2287 = vmul.f32 %v2279, %v2279
  %v2288 = vmul.f32 %v2280, %v2280
  %v2289 = vmul.f32 %v2281, %v2281
  %v2290 = vmul.f32 %v2282, %v2282
  %v2291 = vmul.f32 %v2283, %v2283
  %v2292 = vmul.f32 %v2284, %v2284
  %v2293 = vmul.f32 %v2285, %v2285
  %v2294 = vmul.f32 %v2286, %v2286
  %v2295 = vperm.slane %v2276, 0
  %v2296 = vmul.f32 %v2287, %v2295
  %v2297 = vmul.f32 %v2288, %v2295
  %v2298 = vmul.f32 %v2289, %v2295
  %v2299 = vmul.f32 %v2290, %v2295
  %v2300 = vmul.f32 %v2291, %v2295
  %v2301 = vmul.f32 %v2292, %v2295
  %v2302 = vmul.f32 %v2293, %v2295
  %v2303 = vmul.f32 %v2294, %v2295
  %v2304 = vmul.f32 %v2296, 1.442695
  %v2305 = vpow.pop %v2304
  %v2306 = vmul.f32 %v2297, 1.442695
  %v2307 = vpow.pop %v2306
  %v2308 = vmul.f32 %v2298, 1.442695
  %v2309 = vpow.pop %v2308
  %v2310 = vmul.f32 %v2299, 1.442695
  %v2311 = vpow.pop %v2310
  %v2312 = vmul.f32 %v2300, 1.442695
  %v2313 = vpow.pop %v2312
  %v2314 = vmul.f32 %v2301, 1.442695
  %v2315 = vpow.pop %v2314
  %v2316 = vmul.f32 %v2302, 1.442695
  %v2317 = vpow.pop %v2316
  %v2318 = vmul.f32 %v2303, 1.442695
  %v2319 = vpow.pop %v2318
  %v2320 = vadd.f32 %v2305, %v2307
  %v2321 = vadd.f32 %v2320, %v2309
  %v2322 = vadd.f32 %v2321, %v2311
  %v2323 = vadd.f32 %v2322, %v2313
  %v2324 = vadd.f32 %v2323, %v2315
  %v2325 = vadd.f32 %v2324, %v2317
  %v2326 = vadd.f32 %v2325, %v2319
  %v2327 = vrot.slane %v2326, 4
  %v2328 = vadd.f32 %v2326, %v2327
  %v2329 = vrot.slane %v2328, 2
  %v2330 = vadd.f32 %v2328, %v2329
  %v2331 = vrot.slane %v2330, 1
  %v2332 = vadd.f32 %v2330, %v2331
  %v2333 = vmax.f32 %v2332, 1e-10
  %v2334 = vlog2.pop %v2333
  %v2335 = vmul.f32 %v2334, 0.6931472
  %v2336 = vmul.f32 %v2277, %v2335
  %v2337 = vadd.f32 %v2274, %v2336
  %v2338 = vld [vmem:[%s1 + $0x1e] sm:$0x1]
  %v2339 = vld [vmem:[%s1 + $0x2e] sm:$0x1]
  %v2340 = vld [vmem:[%s1 + $0x3e] sm:$0x1]
  %v2341 = vperm.slane %v2338, 0
  %v2342 = vsub.f32 %v1952, %v2341
  %v2343 = vsub.f32 %v1953, %v2341
  %v2344 = vsub.f32 %v1954, %v2341
  %v2345 = vsub.f32 %v1955, %v2341
  %v2346 = vsub.f32 %v1956, %v2341
  %v2347 = vsub.f32 %v1957, %v2341
  %v2348 = vsub.f32 %v1958, %v2341
  %v2349 = vsub.f32 %v1959, %v2341
  %v2350 = vmul.f32 %v2342, %v2342
  %v2351 = vmul.f32 %v2343, %v2343
  %v2352 = vmul.f32 %v2344, %v2344
  %v2353 = vmul.f32 %v2345, %v2345
  %v2354 = vmul.f32 %v2346, %v2346
  %v2355 = vmul.f32 %v2347, %v2347
  %v2356 = vmul.f32 %v2348, %v2348
  %v2357 = vmul.f32 %v2349, %v2349
  %v2358 = vperm.slane %v2339, 0
  %v2359 = vmul.f32 %v2350, %v2358
  %v2360 = vmul.f32 %v2351, %v2358
  %v2361 = vmul.f32 %v2352, %v2358
  %v2362 = vmul.f32 %v2353, %v2358
  %v2363 = vmul.f32 %v2354, %v2358
  %v2364 = vmul.f32 %v2355, %v2358
  %v2365 = vmul.f32 %v2356, %v2358
  %v2366 = vmul.f32 %v2357, %v2358
  %v2367 = vmul.f32 %v2359, 1.442695
  %v2368 = vpow.pop %v2367
  %v2369 = vmul.f32 %v2360, 1.442695
  %v2370 = vpow.pop %v2369
  %v2371 = vmul.f32 %v2361, 1.442695
  %v2372 = vpow.pop %v2371
  %v2373 = vmul.f32 %v2362, 1.442695
  %v2374 = vpow.pop %v2373
  %v2375 = vmul.f32 %v2363, 1.442695
  %v2376 = vpow.pop %v2375
  %v2377 = vmul.f32 %v2364, 1.442695
  %v2378 = vpow.pop %v2377
  %v2379 = vmul.f32 %v2365, 1.442695
  %v2380 = vpow.pop %v2379
  %v2381 = vmul.f32 %v2366, 1.442695
  %v2382 = vpow.pop %v2381
  %v2383 = vadd.f32 %v2368, %v2370
  %v2384 = vadd.f32 %v2383, %v2372
  %v2385 = vadd.f32 %v2384, %v2374
  %v2386 = vadd.f32 %v2385, %v2376
  %v2387 = vadd.f32 %v2386, %v2378
  %v2388 = vadd.f32 %v2387, %v2380
  %v2389 = vadd.f32 %v2388, %v2382
  %v2390 = vrot.slane %v2389, 4
  %v2391 = vadd.f32 %v2389, %v2390
  %v2392 = vrot.slane %v2391, 2
  %v2393 = vadd.f32 %v2391, %v2392
  %v2394 = vrot.slane %v2393, 1
  %v2395 = vadd.f32 %v2393, %v2394
  %v2396 = vmax.f32 %v2395, 1e-10
  %v2397 = vlog2.pop %v2396
  %v2398 = vmul.f32 %v2397, 0.6931472
  %v2399 = vmul.f32 %v2340, %v2398
  %v2400 = vadd.f32 %v2337, %v2399
  %v2401 = vld [vmem:[%s1 + $0x1f] sm:$0x1]
  %v2402 = vld [vmem:[%s1 + $0x2f] sm:$0x1]
  %v2403 = vld [vmem:[%s1 + $0x3f] sm:$0x1]
  %v2404 = vperm.slane %v2401, 0
  %v2405 = vsub.f32 %v1952, %v2404
  %v2406 = vsub.f32 %v1953, %v2404
  %v2407 = vsub.f32 %v1954, %v2404
  %v2408 = vsub.f32 %v1955, %v2404
  %v2409 = vsub.f32 %v1956, %v2404
  %v2410 = vsub.f32 %v1957, %v2404
  %v2411 = vsub.f32 %v1958, %v2404
  %v2412 = vsub.f32 %v1959, %v2404
  %v2413 = vmul.f32 %v2405, %v2405
  %v2414 = vmul.f32 %v2406, %v2406
  %v2415 = vmul.f32 %v2407, %v2407
  %v2416 = vmul.f32 %v2408, %v2408
  %v2417 = vmul.f32 %v2409, %v2409
  %v2418 = vmul.f32 %v2410, %v2410
  %v2419 = vmul.f32 %v2411, %v2411
  %v2420 = vmul.f32 %v2412, %v2412
  %v2421 = vperm.slane %v2402, 0
  %v2422 = vmul.f32 %v2413, %v2421
  %v2423 = vmul.f32 %v2414, %v2421
  %v2424 = vmul.f32 %v2415, %v2421
  %v2425 = vmul.f32 %v2416, %v2421
  %v2426 = vmul.f32 %v2417, %v2421
  %v2427 = vmul.f32 %v2418, %v2421
  %v2428 = vmul.f32 %v2419, %v2421
  %v2429 = vmul.f32 %v2420, %v2421
  %v2430 = vmul.f32 %v2422, 1.442695
  %v2431 = vpow.pop %v2430
  %v2432 = vmul.f32 %v2423, 1.442695
  %v2433 = vpow.pop %v2432
  %v2434 = vmul.f32 %v2424, 1.442695
  %v2435 = vpow.pop %v2434
  %v2436 = vmul.f32 %v2425, 1.442695
  %v2437 = vpow.pop %v2436
  %v2438 = vmul.f32 %v2426, 1.442695
  %v2439 = vpow.pop %v2438
  %v2440 = vmul.f32 %v2427, 1.442695
  %v2441 = vpow.pop %v2440
  %v2442 = vmul.f32 %v2428, 1.442695
  %v2443 = vpow.pop %v2442
  %v2444 = vmul.f32 %v2429, 1.442695
  %v2445 = vpow.pop %v2444
  %v2446 = vadd.f32 %v2431, %v2433
  %v2447 = vadd.f32 %v2446, %v2435
  %v2448 = vadd.f32 %v2447, %v2437
  %v2449 = vadd.f32 %v2448, %v2439
  %v2450 = vadd.f32 %v2449, %v2441
  %v2451 = vadd.f32 %v2450, %v2443
  %v2452 = vadd.f32 %v2451, %v2445
  %v2453 = vrot.slane %v2452, 4
  %v2454 = vadd.f32 %v2452, %v2453
  %v2455 = vrot.slane %v2454, 2
  %v2456 = vadd.f32 %v2454, %v2455
  %v2457 = vrot.slane %v2456, 1
  %v2458 = vadd.f32 %v2456, %v2457
  %v2459 = vmax.f32 %v2458, 1e-10
  %v2460 = vlog2.pop %v2459
  %v2461 = vmul.f32 %v2460, 0.6931472
  %v2462 = vmul.f32 %v2403, %v2461
  %v2463 = vadd.f32 %v2400, %v2462
  %v2464 = vld [vmem:[%s1 + $0x20] sm:$0x1]
  %v2465 = vld [vmem:[%s1 + $0x30] sm:$0x1]
  %v2466 = vld [vmem:[%s1 + $0x40] sm:$0x1]
  %v2467 = vperm.slane %v2464, 0
  %v2468 = vsub.f32 %v1952, %v2467
  %v2469 = vsub.f32 %v1953, %v2467
  %v2470 = vsub.f32 %v1954, %v2467
  %v2471 = vsub.f32 %v1955, %v2467
  %v2472 = vsub.f32 %v1956, %v2467
  %v2473 = vsub.f32 %v1957, %v2467
  %v2474 = vsub.f32 %v1958, %v2467
  %v2475 = vsub.f32 %v1959, %v2467
  %v2476 = vmul.f32 %v2468, %v2468
  %v2477 = vmul.f32 %v2469, %v2469
  %v2478 = vmul.f32 %v2470, %v2470
  %v2479 = vmul.f32 %v2471, %v2471
  %v2480 = vmul.f32 %v2472, %v2472
  %v2481 = vmul.f32 %v2473, %v2473
  %v2482 = vmul.f32 %v2474, %v2474
  %v2483 = vmul.f32 %v2475, %v2475
  %v2484 = vperm.slane %v2465, 0
  %v2485 = vmul.f32 %v2476, %v2484
  %v2486 = vmul.f32 %v2477, %v2484
  %v2487 = vmul.f32 %v2478, %v2484
  %v2488 = vmul.f32 %v2479, %v2484
  %v2489 = vmul.f32 %v2480, %v2484
  %v2490 = vmul.f32 %v2481, %v2484
  %v2491 = vmul.f32 %v2482, %v2484
  %v2492 = vmul.f32 %v2483, %v2484
  %v2493 = vmul.f32 %v2485, 1.442695
  %v2494 = vpow.pop %v2493
  %v2495 = vmul.f32 %v2486, 1.442695
  %v2496 = vpow.pop %v2495
  %v2497 = vmul.f32 %v2487, 1.442695
  %v2498 = vpow.pop %v2497
  %v2499 = vmul.f32 %v2488, 1.442695
  %v2500 = vpow.pop %v2499
  %v2501 = vmul.f32 %v2489, 1.442695
  %v2502 = vpow.pop %v2501
  %v2503 = vmul.f32 %v2490, 1.442695
  %v2504 = vpow.pop %v2503
  %v2505 = vmul.f32 %v2491, 1.442695
  %v2506 = vpow.pop %v2505
  %v2507 = vmul.f32 %v2492, 1.442695
  %v2508 = vpow.pop %v2507
  %v2509 = vadd.f32 %v2494, %v2496
  %v2510 = vadd.f32 %v2509, %v2498
  %v2511 = vadd.f32 %v2510, %v2500
  %v2512 = vadd.f32 %v2511, %v2502
  %v2513 = vadd.f32 %v2512, %v2504
  %v2514 = vadd.f32 %v2513, %v2506
  %v2515 = vadd.f32 %v2514, %v2508
  %v2516 = vrot.slane %v2515, 4
  %v2517 = vadd.f32 %v2515, %v2516
  %v2518 = vrot.slane %v2517, 2
  %v2519 = vadd.f32 %v2517, %v2518
  %v2520 = vrot.slane %v2519, 1
  %v2521 = vadd.f32 %v2519, %v2520
  %v2522 = vmax.f32 %v2521, 1e-10
  %v2523 = vlog2.pop %v2522
  %v2524 = vmul.f32 %v2523, 0.6931472
  %v2525 = vmul.f32 %v2466, %v2524
  %v2526 = vadd.f32 %v2463, %v2525
  %v2527 = vld [vmem:[%s1 + $0x21] sm:$0x1]
  %v2528 = vld [vmem:[%s1 + $0x31] sm:$0x1]
  %v2529 = vld [vmem:[%s1 + $0x41] sm:$0x1]
  %v2530 = vperm.slane %v2527, 0
  %v2531 = vsub.f32 %v1952, %v2530
  %v2532 = vsub.f32 %v1953, %v2530
  %v2533 = vsub.f32 %v1954, %v2530
  %v2534 = vsub.f32 %v1955, %v2530
  %v2535 = vsub.f32 %v1956, %v2530
  %v2536 = vsub.f32 %v1957, %v2530
  %v2537 = vsub.f32 %v1958, %v2530
  %v2538 = vsub.f32 %v1959, %v2530
  %v2539 = vmul.f32 %v2531, %v2531
  %v2540 = vmul.f32 %v2532, %v2532
  %v2541 = vmul.f32 %v2533, %v2533
  %v2542 = vmul.f32 %v2534, %v2534
  %v2543 = vmul.f32 %v2535, %v2535
  %v2544 = vmul.f32 %v2536, %v2536
  %v2545 = vmul.f32 %v2537, %v2537
  %v2546 = vmul.f32 %v2538, %v2538
  %v2547 = vperm.slane %v2528, 0
  %v2548 = vmul.f32 %v2539, %v2547
  %v2549 = vmul.f32 %v2540, %v2547
  %v2550 = vmul.f32 %v2541, %v2547
  %v2551 = vmul.f32 %v2542, %v2547
  %v2552 = vmul.f32 %v2543, %v2547
  %v2553 = vmul.f32 %v2544, %v2547
  %v2554 = vmul.f32 %v2545, %v2547
  %v2555 = vmul.f32 %v2546, %v2547
  %v2556 = vmul.f32 %v2548, 1.442695
  %v2557 = vpow.pop %v2556
  %v2558 = vmul.f32 %v2549, 1.442695
  %v2559 = vpow.pop %v2558
  %v2560 = vmul.f32 %v2550, 1.442695
  %v2561 = vpow.pop %v2560
  %v2562 = vmul.f32 %v2551, 1.442695
  %v2563 = vpow.pop %v2562
  %v2564 = vmul.f32 %v2552, 1.442695
  %v2565 = vpow.pop %v2564
  %v2566 = vmul.f32 %v2553, 1.442695
  %v2567 = vpow.pop %v2566
  %v2568 = vmul.f32 %v2554, 1.442695
  %v2569 = vpow.pop %v2568
  %v2570 = vmul.f32 %v2555, 1.442695
  %v2571 = vpow.pop %v2570
  %v2572 = vadd.f32 %v2557, %v2559
  %v2573 = vadd.f32 %v2572, %v2561
  %v2574 = vadd.f32 %v2573, %v2563
  %v2575 = vadd.f32 %v2574, %v2565
  %v2576 = vadd.f32 %v2575, %v2567
  %v2577 = vadd.f32 %v2576, %v2569
  %v2578 = vadd.f32 %v2577, %v2571
  %v2579 = vrot.slane %v2578, 4
  %v2580 = vadd.f32 %v2578, %v2579
  %v2581 = vrot.slane %v2580, 2
  %v2582 = vadd.f32 %v2580, %v2581
  %v2583 = vrot.slane %v2582, 1
  %v2584 = vadd.f32 %v2582, %v2583
  %v2585 = vmax.f32 %v2584, 1e-10
  %v2586 = vlog2.pop %v2585
  %v2587 = vmul.f32 %v2586, 0.6931472
  %v2588 = vmul.f32 %v2529, %v2587
  %v2589 = vadd.f32 %v2526, %v2588
  %v2590 = vld [vmem:[%s1 + $0x2] sm:$0x1]
  %2592 = vset.pattern.permute.xlu0 0
  %2593 = vperm.xlu0 %2592, %v2590
  %v2594 = vpop.permute.xlu0 %2593
  %2596 = vmatpush.msra.mxu0 %v1689
  %2597 = vmatpush.msra.mxu0 %v1688
  %2598 = vmatpush.msra.mxu0 %v1687
  %2599 = vmatpush.msra.mxu0 %v1686
  %2600 = vmatpush.msra.mxu0 %v1685
  %2601 = vmatpush.msra.mxu0 %v1684
  %2602 = vmatpush.msra.mxu0 %v1683
  %2603 = vmatpush.msra.mxu0 %v1682
  %2604 = vmatpush.msra.mxu0 %v1681
  %2605 = vmatpush.msra.mxu0 %v1680
  %2606 = vmatpush.msra.mxu0 %v1679
  %2607 = vmatpush.msra.mxu0 %v1678
  %2608 = vmatpush.msra.mxu0 %v1677
  %2609 = vmatpush.msra.mxu0 %v1676
  %2610 = vmatpush.msra.mxu0 %v1675
  %2611 = vmatpush.msra.mxu0 %v1674
  %2612 = vmatmul.f32.gmra.mxu0 %v2589
  %v2613 = vpop.f32.mrf.mxu0
  %v2614 = vadd.f32 %v2594, %v2613
  %2615 = vdwg.mxu0
  %vm2616 = vcmask 57344
  %2617 = vst.msk [vmem:[%s3] sm:$0x1] %vm2616, %v2614
  // Predicated region
  $region14: #{gca_forward.1} parent=0 // pred_check
    _
  $region15: #{gca_forward.1} parent=0 // pred_check_branch
    %2619 = sbr.rel (0) target = $region17
  $region16: #{gca_forward.1} parent=0 // pred_region
    _
  $region17: #{gca_forward.1} parent=0 // pred_fallthru
    _
  // Predicated region
  $region18: #{gca_forward.1} parent=0 // pred_check
    _
  $region19: #{gca_forward.1} parent=0 // pred_check_branch
    %2621 = sbr.rel (0) target = $region21
  $region20: #{gca_forward.1} parent=0 // pred_region
    _
  $region21: #{gca_forward.1} parent=0 // pred_fallthru
    _

</llo_original>
